<compile_context>
chip_gen: v5e
topology: v5e:2x2
jax: 0.10.0
libtpu: 0.0.40
codegen_flags: <defaults>
</compile_context>

<pallas_src>
import math
import functools

import jax
import jax.numpy as jnp
from jax.experimental import pallas as pl
from jax.experimental.pallas import tpu as pltpu


def _attn_kernel(q_ref, k_ref, v_ref, mask_ref, o_ref, *, scale):
    # q_ref/k_ref/v_ref: (1, Hb, S, D) f32 ; mask_ref: (1, S, S) f32
    # o_ref: (1, Hb, S, D) f32
    m = mask_ref[0]                 # (S, S) f32, shared by all heads
    num_heads = q_ref.shape[1]

    def per_head(h, carry):
        # In-kernel bf16 cast of the loaded tiles (MXU-native operands,
        # f32 accumulation); HBM traffic stays f32-only, no wrapper cast.
        qb = q_ref[0, h].astype(jnp.bfloat16)        # (S, D)
        kb = k_ref[0, h].astype(jnp.bfloat16)        # (S, D)
        vb = v_ref[0, h].astype(jnp.bfloat16)        # (S, D)

        # Contract on the last dim of both operands (no K transpose / XLU).
        s = jnp.einsum("qd,kd->qk", qb, kb,
                       preferred_element_type=jnp.float32)   # (S, S) f32
        # Scale + mask in f32 (no bf16 VALU work; matters on v5e).
        s = s * scale + m

        # Numerically-stable softmax along the key axis.
        s_max = jnp.max(s, axis=-1, keepdims=True)
        e = jnp.exp(s - s_max)
        denom = jnp.sum(e, axis=-1, keepdims=True)
        p = e * pl.reciprocal(denom, approx=True)            # (S, S) f32

        out = jnp.einsum("qk,kd->qd", p.astype(jnp.bfloat16), vb,
                         preferred_element_type=jnp.float32)  # (S, D) f32
        o_ref[0, h] = out.astype(o_ref.dtype)
        return carry

    # Per-head sequence bounds live ranges (avoids vreg spills of the full
    # (H,S,S) scores/probs) while staying fully unrolled for the scheduler.
    jax.lax.fori_loop(0, num_heads, per_head, None, unroll=True)


def _num_head_splits(num_heads: int) -> int:
    # v7x has 2 TensorCores per chip: split heads across a parallel grid axis
    # so both cores work.  v5e/v6e (single TC) keep a single grid step to
    # avoid the extra ~0.35us per-step pipeline overhead.
    try:
        kind = jax.devices()[0].device_kind.lower()
    except Exception:
        return 1
    if ("v7" in kind or "tpu7" in kind) and num_heads % 2 == 0:
        return 2
    return 1


@jax.jit
def masked_attention(Q, K, V, mask):
    B, H, S, D = Q.shape
    assert K.shape == (B, H, S, D) and V.shape == (B, H, S, D)
    assert mask.shape == (B, S, S)

    hs = _num_head_splits(H)        # 2 on v7x, 1 elsewhere (trace-time)
    hb = H // hs

    kernel = functools.partial(_attn_kernel, scale=1.0 / math.sqrt(float(D)))

    qkv_spec = pl.BlockSpec((1, hb, S, D), lambda b, h: (b, h, 0, 0))
    mask_spec = pl.BlockSpec((1, S, S), lambda b, h: (b, 0, 0))
    out_spec = pl.BlockSpec((1, hb, S, D), lambda b, h: (b, h, 0, 0))

    return pl.pallas_call(
        kernel,
        out_shape=jax.ShapeDtypeStruct((B, H, S, D), jnp.float32),
        grid_spec=pl.GridSpec(
            grid=(B, hs),
            in_specs=[qkv_spec, qkv_spec, qkv_spec, mask_spec],
            out_specs=out_spec,
        ),
        compiler_params=pltpu.CompilerParams(
            dimension_semantics=("parallel", "parallel"),
        ),
    )(Q, K, V, mask)


def reference_f32(Q, K, V, mask):
    D = Q.shape[-1]
    qk = jnp.einsum("bhqd,bhkd->bhqk", Q, K) / math.sqrt(float(D))
    qk = qk + mask[:, None, :, :]
    attn = jax.nn.softmax(qk, axis=-1)
    return jnp.einsum("bhqk,bhkd->bhqd", attn, V)


def reference_bf16(Q, K, V, mask):
    # Precision-matched reference (bf16 matmul operands, f32 accumulation,
    # f32 scale+mask) so the kernel can be checked with a tight tolerance.
    D = Q.shape[-1]
    scale = 1.0 / math.sqrt(float(D))
    qb = Q.astype(jnp.bfloat16)
    kb = K.astype(jnp.bfloat16)
    vb = V.astype(jnp.bfloat16)
    s = jnp.einsum("bhqd,bhkd->bhqk", qb, kb,
                   preferred_element_type=jnp.float32)
    s = s * scale + mask[:, None, :, :]
    p = jax.nn.softmax(s, axis=-1)
    return jnp.einsum("bhqk,bhkd->bhqd", p.astype(jnp.bfloat16), vb,
                      preferred_element_type=jnp.float32)


if __name__ == "__main__":
    B, H, S, D = 1, 8, 56, 56  # matches the module globals K/V: (1, 8, 56, 56)

    key = jax.random.PRNGKey(0)
    kq, kk, kv, km, kw0, kw1 = jax.random.split(key, 6)

    Q = jax.random.normal(kq, (B, H, S, D), dtype=jnp.float32)
    K = jax.random.normal(kk, (B, H, S, D), dtype=jnp.float32)
    V = jax.random.normal(kv, (B, H, S, D), dtype=jnp.float32)
    # additive mask: -1e9 where rand > 0.7, else 0 (intended masking semantics)
    mask = jnp.where(
        jax.random.uniform(km, (B, S, S)) > 0.7,
        jnp.float32(-1e9),
        jnp.float32(0.0),
    )

    # Deterministic params from the module __init__ (unused by its forward).
    weightQ = jax.random.normal(kw0, (8, 8), dtype=jnp.float32)
    weightK = jax.random.normal(kw1, (8, 8), dtype=jnp.float32)
    # TODO(synk): self.weights (weightQ/weightK) are never applied in the
    # reference forward, so they are constructed but not used here either.

    out = jax.block_until_ready(masked_attention(Q, K, V, mask))
    assert out.shape == (B, H, S, D)

    # Tight check vs. a precision-matched (bf16 matmul, f32 accumulation) ref.
    ref_b = reference_bf16(Q, K, V, mask)
    assert jnp.allclose(out, ref_b, atol=1e-2, rtol=1e-2)

    # Sanity check vs. the pure-f32 reference (bf16-appropriate tolerance).
    ref_f = reference_f32(Q, K, V, mask)
    assert jnp.allclose(out, ref_f, atol=5e-2, rtol=5e-2)

    print("KERNEL_OK")
</pallas_src>

<mosaic_0001>
module attributes {stable_mosaic.version = 11 : i64} {
  func.func @_attn_kernel(%arg0: i32, %arg1: i32, %arg2: memref<1x8x56x56xf32, #tpu.memory_space<vmem>>, %arg3: memref<1x8x56x56xf32, #tpu.memory_space<vmem>>, %arg4: memref<1x8x56x56xf32, #tpu.memory_space<vmem>>, %arg5: memref<1x56x56xf32, #tpu.memory_space<vmem>>, %arg6: memref<1x8x56x56xf32, #tpu.memory_space<vmem>>) attributes {dimension_semantics = [#tpu.dimension_semantics<parallel>, #tpu.dimension_semantics<parallel>], iteration_bounds = array<i64: 1, 1>, scalar_prefetch = 0 : i64, scratch_operands = 0 : i64, tpu.core_type = #tpu.core_type<tc>, window_params = [{transform_indices = @transform_0, window_bounds = array<i64: 1, 8, 56, 56>}, {transform_indices = @transform_1, window_bounds = array<i64: 1, 8, 56, 56>}, {transform_indices = @transform_2, window_bounds = array<i64: 1, 8, 56, 56>}, {transform_indices = @transform_3, window_bounds = array<i64: 1, 56, 56>}, {transform_indices = @transform_4, window_bounds = array<i64: 1, 8, 56, 56>}]} {
    %c0 = arith.constant 0 : index
    %c0_0 = arith.constant 0 : index
    %c0_1 = arith.constant 0 : index
    %0 = vector.load %arg5[%c0, %c0_0, %c0_1] : memref<1x56x56xf32, #tpu.memory_space<vmem>>, vector<1x56x56xf32>
    %1 = vector.shape_cast %0 : vector<1x56x56xf32> to vector<56x56xf32>
    %c0_i32 = arith.constant 0 : i32
    %c0_2 = arith.constant 0 : index
    %2 = arith.index_cast %c0_i32 : i32 to index
    %c0_3 = arith.constant 0 : index
    %c0_4 = arith.constant 0 : index
    %3 = vector.load %arg2[%c0_2, %2, %c0_3, %c0_4] : memref<1x8x56x56xf32, #tpu.memory_space<vmem>>, vector<1x1x56x56xf32>
    %4 = vector.shape_cast %3 : vector<1x1x56x56xf32> to vector<56x56xf32>
    %5 = arith.truncf %4 : vector<56x56xf32> to vector<56x56xbf16>
    %c0_5 = arith.constant 0 : index
    %6 = arith.index_cast %c0_i32 : i32 to index
    %c0_6 = arith.constant 0 : index
    %c0_7 = arith.constant 0 : index
    %7 = vector.load %arg3[%c0_5, %6, %c0_6, %c0_7] : memref<1x8x56x56xf32, #tpu.memory_space<vmem>>, vector<1x1x56x56xf32>
    %8 = vector.shape_cast %7 : vector<1x1x56x56xf32> to vector<56x56xf32>
    %9 = arith.truncf %8 : vector<56x56xf32> to vector<56x56xbf16>
    %c0_8 = arith.constant 0 : index
    %10 = arith.index_cast %c0_i32 : i32 to index
    %c0_9 = arith.constant 0 : index
    %c0_10 = arith.constant 0 : index
    %11 = vector.load %arg4[%c0_8, %10, %c0_9, %c0_10] : memref<1x8x56x56xf32, #tpu.memory_space<vmem>>, vector<1x1x56x56xf32>
    %12 = vector.shape_cast %11 : vector<1x1x56x56xf32> to vector<56x56xf32>
    %13 = arith.truncf %12 : vector<56x56xf32> to vector<56x56xbf16>
    "tpu.trace_start"() <{level = 10 : i32, message = "qd,kd->qk"}> : () -> ()
    %cst = arith.constant dense<0.000000e+00> : vector<56x56xf32>
    %14 = tpu.matmul %5, %9, %cst {dimension_numbers = #tpu.dot_dimension_numbers<[1], [1], [0], [0], [0, 0, 1, 0], [], []>} : vector<56x56xbf16>, vector<56x56xbf16>, vector<56x56xf32> -> vector<56x56xf32>
    "tpu.trace_stop"() : () -> ()
    %cst_11 = arith.constant 0.133630618 : f32
    %15 = vector.broadcast %cst_11 : f32 to vector<56x56xf32>
    %16 = arith.mulf %14, %15 : vector<56x56xf32>
    %17 = arith.addf %16, %1 : vector<56x56xf32>
    %cst_12 = arith.constant dense<0xFF800000> : vector<56xf32>
    %18 = vector.multi_reduction <maximumf>, %17, %cst_12 [1] : vector<56x56xf32> to vector<56xf32>
    %19 = vector.shape_cast %18 : vector<56xf32> to vector<56x1xf32>
    %20 = vector.broadcast %19 : vector<56x1xf32> to vector<56x56xf32>
    %21 = arith.subf %17, %20 : vector<56x56xf32>
    %22 = math.exp %21 : vector<56x56xf32>
    %cst_13 = arith.constant dense<0.000000e+00> : vector<56xf32>
    %23 = vector.multi_reduction <add>, %22, %cst_13 [1] : vector<56x56xf32> to vector<56xf32>
    %24 = vector.shape_cast %23 : vector<56xf32> to vector<56x1xf32>
    %25 = tpu.reciprocal %24 {approx = true} : vector<56x1xf32> -> vector<56x1xf32>
    %26 = vector.broadcast %25 : vector<56x1xf32> to vector<56x56xf32>
    %27 = arith.mulf %22, %26 : vector<56x56xf32>
    %28 = arith.truncf %27 : vector<56x56xf32> to vector<56x56xbf16>
    "tpu.trace_start"() <{level = 10 : i32, message = "qk,kd->qd"}> : () -> ()
    %cst_14 = arith.constant dense<0.000000e+00> : vector<56x56xf32>
    %29 = tpu.matmul %28, %13, %cst_14 {dimension_numbers = #tpu.dot_dimension_numbers<[1], [0], [0], [1], [0, 0, 1, 1], [], []>} : vector<56x56xbf16>, vector<56x56xbf16>, vector<56x56xf32> -> vector<56x56xf32>
    "tpu.trace_stop"() : () -> ()
    %c0_15 = arith.constant 0 : index
    %30 = arith.index_cast %c0_i32 : i32 to index
    %c0_16 = arith.constant 0 : index
    %c0_17 = arith.constant 0 : index
    %31 = vector.load %arg6[%c0_15, %30, %c0_16, %c0_17] : memref<1x8x56x56xf32, #tpu.memory_space<vmem>>, vector<1x1x56x56xf32>
    %32 = vector.shape_cast %31 : vector<1x1x56x56xf32> to vector<56x56xf32>
    %33 = vector.shape_cast %29 : vector<56x56xf32> to vector<1x1x56x56xf32>
    tpu.vector_store %arg6[%c0_15, %30, %c0_16, %c0_17], %33 {strides = array<i32>} : memref<1x8x56x56xf32, #tpu.memory_space<vmem>>, vector<1x1x56x56xf32>,
    %c1_i32 = arith.constant 1 : i32
    %c0_18 = arith.constant 0 : index
    %34 = arith.index_cast %c1_i32 : i32 to index
    %c0_19 = arith.constant 0 : index
    %c0_20 = arith.constant 0 : index
    %35 = vector.load %arg2[%c0_18, %34, %c0_19, %c0_20] : memref<1x8x56x56xf32, #tpu.memory_space<vmem>>, vector<1x1x56x56xf32>
    %36 = vector.shape_cast %35 : vector<1x1x56x56xf32> to vector<56x56xf32>
    %37 = arith.truncf %36 : vector<56x56xf32> to vector<56x56xbf16>
    %c0_21 = arith.constant 0 : index
    %38 = arith.index_cast %c1_i32 : i32 to index
    %c0_22 = arith.constant 0 : index
    %c0_23 = arith.constant 0 : index
    %39 = vector.load %arg3[%c0_21, %38, %c0_22, %c0_23] : memref<1x8x56x56xf32, #tpu.memory_space<vmem>>, vector<1x1x56x56xf32>
    %40 = vector.shape_cast %39 : vector<1x1x56x56xf32> to vector<56x56xf32>
    %41 = arith.truncf %40 : vector<56x56xf32> to vector<56x56xbf16>
    %c0_24 = arith.constant 0 : index
    %42 = arith.index_cast %c1_i32 : i32 to index
    %c0_25 = arith.constant 0 : index
    %c0_26 = arith.constant 0 : index
    %43 = vector.load %arg4[%c0_24, %42, %c0_25, %c0_26] : memref<1x8x56x56xf32, #tpu.memory_space<vmem>>, vector<1x1x56x56xf32>
    %44 = vector.shape_cast %43 : vector<1x1x56x56xf32> to vector<56x56xf32>
    %45 = arith.truncf %44 : vector<56x56xf32> to vector<56x56xbf16>
    "tpu.trace_start"() <{level = 10 : i32, message = "qd,kd->qk"}> : () -> ()
    %cst_27 = arith.constant dense<0.000000e+00> : vector<56x56xf32>
    %46 = tpu.matmul %37, %41, %cst_27 {dimension_numbers = #tpu.dot_dimension_numbers<[1], [1], [0], [0], [0, 0, 1, 0], [], []>} : vector<56x56xbf16>, vector<56x56xbf16>, vector<56x56xf32> -> vector<56x56xf32>
    "tpu.trace_stop"() : () -> ()
    %cst_28 = arith.constant 0.133630618 : f32
    %47 = vector.broadcast %cst_28 : f32 to vector<56x56xf32>
    %48 = arith.mulf %46, %47 : vector<56x56xf32>
    %49 = arith.addf %48, %1 : vector<56x56xf32>
    %cst_29 = arith.constant dense<0xFF800000> : vector<56xf32>
    %50 = vector.multi_reduction <maximumf>, %49, %cst_29 [1] : vector<56x56xf32> to vector<56xf32>
    %51 = vector.shape_cast %50 : vector<56xf32> to vector<56x1xf32>
    %52 = vector.broadcast %51 : vector<56x1xf32> to vector<56x56xf32>
    %53 = arith.subf %49, %52 : vector<56x56xf32>
    %54 = math.exp %53 : vector<56x56xf32>
    %cst_30 = arith.constant dense<0.000000e+00> : vector<56xf32>
    %55 = vector.multi_reduction <add>, %54, %cst_30 [1] : vector<56x56xf32> to vector<56xf32>
    %56 = vector.shape_cast %55 : vector<56xf32> to vector<56x1xf32>
    %57 = tpu.reciprocal %56 {approx = true} : vector<56x1xf32> -> vector<56x1xf32>
    %58 = vector.broadcast %57 : vector<56x1xf32> to vector<56x56xf32>
    %59 = arith.mulf %54, %58 : vector<56x56xf32>
    %60 = arith.truncf %59 : vector<56x56xf32> to vector<56x56xbf16>
    "tpu.trace_start"() <{level = 10 : i32, message = "qk,kd->qd"}> : () -> ()
    %cst_31 = arith.constant dense<0.000000e+00> : vector<56x56xf32>
    %61 = tpu.matmul %60, %45, %cst_31 {dimension_numbers = #tpu.dot_dimension_numbers<[1], [0], [0], [1], [0, 0, 1, 1], [], []>} : vector<56x56xbf16>, vector<56x56xbf16>, vector<56x56xf32> -> vector<56x56xf32>
    "tpu.trace_stop"() : () -> ()
    %c0_32 = arith.constant 0 : index
    %62 = arith.index_cast %c1_i32 : i32 to index
    %c0_33 = arith.constant 0 : index
    %c0_34 = arith.constant 0 : index
    %63 = vector.load %arg6[%c0_32, %62, %c0_33, %c0_34] : memref<1x8x56x56xf32, #tpu.memory_space<vmem>>, vector<1x1x56x56xf32>
    %64 = vector.shape_cast %63 : vector<1x1x56x56xf32> to vector<56x56xf32>
    %65 = vector.shape_cast %61 : vector<56x56xf32> to vector<1x1x56x56xf32>
    tpu.vector_store %arg6[%c0_32, %62, %c0_33, %c0_34], %65 {strides = array<i32>} : memref<1x8x56x56xf32, #tpu.memory_space<vmem>>, vector<1x1x56x56xf32>,
    %c2_i32 = arith.constant 2 : i32
    %c0_35 = arith.constant 0 : index
    %66 = arith.index_cast %c2_i32 : i32 to index
    %c0_36 = arith.constant 0 : index
    %c0_37 = arith.constant 0 : index
    %67 = vector.load %arg2[%c0_35, %66, %c0_36, %c0_37] : memref<1x8x56x56xf32, #tpu.memory_space<vmem>>, vector<1x1x56x56xf32>
    %68 = vector.shape_cast %67 : vector<1x1x56x56xf32> to vector<56x56xf32>
    %69 = arith.truncf %68 : vector<56x56xf32> to vector<56x56xbf16>
    %c0_38 = arith.constant 0 : index
    %70 = arith.index_cast %c2_i32 : i32 to index
    %c0_39 = arith.constant 0 : index
    %c0_40 = arith.constant 0 : index
    %71 = vector.load %arg3[%c0_38, %70, %c0_39, %c0_40] : memref<1x8x56x56xf32, #tpu.memory_space<vmem>>, vector<1x1x56x56xf32>
    %72 = vector.shape_cast %71 : vector<1x1x56x56xf32> to vector<56x56xf32>
    %73 = arith.truncf %72 : vector<56x56xf32> to vector<56x56xbf16>
    %c0_41 = arith.constant 0 : index
    %74 = arith.index_cast %c2_i32 : i32 to index
    %c0_42 = arith.constant 0 : index
    %c0_43 = arith.constant 0 : index
    %75 = vector.load %arg4[%c0_41, %74, %c0_42, %c0_43] : memref<1x8x56x56xf32, #tpu.memory_space<vmem>>, vector<1x1x56x56xf32>
    %76 = vector.shape_cast %75 : vector<1x1x56x56xf32> to vector<56x56xf32>
    %77 = arith.truncf %76 : vector<56x56xf32> to vector<56x56xbf16>
    "tpu.trace_start"() <{level = 10 : i32, message = "qd,kd->qk"}> : () -> ()
    %cst_44 = arith.constant dense<0.000000e+00> : vector<56x56xf32>
    %78 = tpu.matmul %69, %73, %cst_44 {dimension_numbers = #tpu.dot_dimension_numbers<[1], [1], [0], [0], [0, 0, 1, 0], [], []>} : vector<56x56xbf16>, vector<56x56xbf16>, vector<56x56xf32> -> vector<56x56xf32>
    "tpu.trace_stop"() : () -> ()
    %cst_45 = arith.constant 0.133630618 : f32
    %79 = vector.broadcast %cst_45 : f32 to vector<56x56xf32>
    %80 = arith.mulf %78, %79 : vector<56x56xf32>
    %81 = arith.addf %80, %1 : vector<56x56xf32>
    %cst_46 = arith.constant dense<0xFF800000> : vector<56xf32>
    %82 = vector.multi_reduction <maximumf>, %81, %cst_46 [1] : vector<56x56xf32> to vector<56xf32>
    %83 = vector.shape_cast %82 : vector<56xf32> to vector<56x1xf32>
    %84 = vector.broadcast %83 : vector<56x1xf32> to vector<56x56xf32>
    %85 = arith.subf %81, %84 : vector<56x56xf32>
    %86 = math.exp %85 : vector<56x56xf32>
    %cst_47 = arith.constant dense<0.000000e+00> : vector<56xf32>
    %87 = vector.multi_reduction <add>, %86, %cst_47 [1] : vector<56x56xf32> to vector<56xf32>
    %88 = vector.shape_cast %87 : vector<56xf32> to vector<56x1xf32>
    %89 = tpu.reciprocal %88 {approx = true} : vector<56x1xf32> -> vector<56x1xf32>
    %90 = vector.broadcast %89 : vector<56x1xf32> to vector<56x56xf32>
    %91 = arith.mulf %86, %90 : vector<56x56xf32>
    %92 = arith.truncf %91 : vector<56x56xf32> to vector<56x56xbf16>
    "tpu.trace_start"() <{level = 10 : i32, message = "qk,kd->qd"}> : () -> ()
    %cst_48 = arith.constant dense<0.000000e+00> : vector<56x56xf32>
    %93 = tpu.matmul %92, %77, %cst_48 {dimension_numbers = #tpu.dot_dimension_numbers<[1], [0], [0], [1], [0, 0, 1, 1], [], []>} : vector<56x56xbf16>, vector<56x56xbf16>, vector<56x56xf32> -> vector<56x56xf32>
    "tpu.trace_stop"() : () -> ()
    %c0_49 = arith.constant 0 : index
    %94 = arith.index_cast %c2_i32 : i32 to index
    %c0_50 = arith.constant 0 : index
    %c0_51 = arith.constant 0 : index
    %95 = vector.load %arg6[%c0_49, %94, %c0_50, %c0_51] : memref<1x8x56x56xf32, #tpu.memory_space<vmem>>, vector<1x1x56x56xf32>
    %96 = vector.shape_cast %95 : vector<1x1x56x56xf32> to vector<56x56xf32>
    %97 = vector.shape_cast %93 : vector<56x56xf32> to vector<1x1x56x56xf32>
    tpu.vector_store %arg6[%c0_49, %94, %c0_50, %c0_51], %97 {strides = array<i32>} : memref<1x8x56x56xf32, #tpu.memory_space<vmem>>, vector<1x1x56x56xf32>,
    %c3_i32 = arith.constant 3 : i32
    %c0_52 = arith.constant 0 : index
    %98 = arith.index_cast %c3_i32 : i32 to index
    %c0_53 = arith.constant 0 : index
    %c0_54 = arith.constant 0 : index
    %99 = vector.load %arg2[%c0_52, %98, %c0_53, %c0_54] : memref<1x8x56x56xf32, #tpu.memory_space<vmem>>, vector<1x1x56x56xf32>
    %100 = vector.shape_cast %99 : vector<1x1x56x56xf32> to vector<56x56xf32>
    %101 = arith.truncf %100 : vector<56x56xf32> to vector<56x56xbf16>
    %c0_55 = arith.constant 0 : index
    %102 = arith.index_cast %c3_i32 : i32 to index
    %c0_56 = arith.constant 0 : index
    %c0_57 = arith.constant 0 : index
    %103 = vector.load %arg3[%c0_55, %102, %c0_56, %c0_57] : memref<1x8x56x56xf32, #tpu.memory_space<vmem>>, vector<1x1x56x56xf32>
    %104 = vector.shape_cast %103 : vector<1x1x56x56xf32> to vector<56x56xf32>
    %105 = arith.truncf %104 : vector<56x56xf32> to vector<56x56xbf16>
    %c0_58 = arith.constant 0 : index
    %106 = arith.index_cast %c3_i32 : i32 to index
    %c0_59 = arith.constant 0 : index
    %c0_60 = arith.constant 0 : index
    %107 = vector.load %arg4[%c0_58, %106, %c0_59, %c0_60] : memref<1x8x56x56xf32, #tpu.memory_space<vmem>>, vector<1x1x56x56xf32>
    %108 = vector.shape_cast %107 : vector<1x1x56x56xf32> to vector<56x56xf32>
    %109 = arith.truncf %108 : vector<56x56xf32> to vector<56x56xbf16>
    "tpu.trace_start"() <{level = 10 : i32, message = "qd,kd->qk"}> : () -> ()
    %cst_61 = arith.constant dense<0.000000e+00> : vector<56x56xf32>
    %110 = tpu.matmul %101, %105, %cst_61 {dimension_numbers = #tpu.dot_dimension_numbers<[1], [1], [0], [0], [0, 0, 1, 0], [], []>} : vector<56x56xbf16>, vector<56x56xbf16>, vector<56x56xf32> -> vector<56x56xf32>
    "tpu.trace_stop"() : () -> ()
    %cst_62 = arith.constant 0.133630618 : f32
    %111 = vector.broadcast %cst_62 : f32 to vector<56x56xf32>
    %112 = arith.mulf %110, %111 : vector<56x56xf32>
    %113 = arith.addf %112, %1 : vector<56x56xf32>
    %cst_63 = arith.constant dense<0xFF800000> : vector<56xf32>
    %114 = vector.multi_reduction <maximumf>, %113, %cst_63 [1] : vector<56x56xf32> to vector<56xf32>
    %115 = vector.shape_cast %114 : vector<56xf32> to vector<56x1xf32>
    %116 = vector.broadcast %115 : vector<56x1xf32> to vector<56x56xf32>
    %117 = arith.subf %113, %116 : vector<56x56xf32>
    %118 = math.exp %117 : vector<56x56xf32>
    %cst_64 = arith.constant dense<0.000000e+00> : vector<56xf32>
    %119 = vector.multi_reduction <add>, %118, %cst_64 [1] : vector<56x56xf32> to vector<56xf32>
    %120 = vector.shape_cast %119 : vector<56xf32> to vector<56x1xf32>
    %121 = tpu.reciprocal %120 {approx = true} : vector<56x1xf32> -> vector<56x1xf32>
    %122 = vector.broadcast %121 : vector<56x1xf32> to vector<56x56xf32>
    %123 = arith.mulf %118, %122 : vector<56x56xf32>
    %124 = arith.truncf %123 : vector<56x56xf32> to vector<56x56xbf16>
    "tpu.trace_start"() <{level = 10 : i32, message = "qk,kd->qd"}> : () -> ()
    %cst_65 = arith.constant dense<0.000000e+00> : vector<56x56xf32>
    %125 = tpu.matmul %124, %109, %cst_65 {dimension_numbers = #tpu.dot_dimension_numbers<[1], [0], [0], [1], [0, 0, 1, 1], [], []>} : vector<56x56xbf16>, vector<56x56xbf16>, vector<56x56xf32> -> vector<56x56xf32>
    "tpu.trace_stop"() : () -> ()
    %c0_66 = arith.constant 0 : index
    %126 = arith.index_cast %c3_i32 : i32 to index
    %c0_67 = arith.constant 0 : index
    %c0_68 = arith.constant 0 : index
    %127 = vector.load %arg6[%c0_66, %126, %c0_67, %c0_68] : memref<1x8x56x56xf32, #tpu.memory_space<vmem>>, vector<1x1x56x56xf32>
    %128 = vector.shape_cast %127 : vector<1x1x56x56xf32> to vector<56x56xf32>
    %129 = vector.shape_cast %125 : vector<56x56xf32> to vector<1x1x56x56xf32>
    tpu.vector_store %arg6[%c0_66, %126, %c0_67, %c0_68], %129 {strides = array<i32>} : memref<1x8x56x56xf32, #tpu.memory_space<vmem>>, vector<1x1x56x56xf32>,
    %c4_i32 = arith.constant 4 : i32
    %c0_69 = arith.constant 0 : index
    %130 = arith.index_cast %c4_i32 : i32 to index
    %c0_70 = arith.constant 0 : index
    %c0_71 = arith.constant 0 : index
    %131 = vector.load %arg2[%c0_69, %130, %c0_70, %c0_71] : memref<1x8x56x56xf32, #tpu.memory_space<vmem>>, vector<1x1x56x56xf32>
    %132 = vector.shape_cast %131 : vector<1x1x56x56xf32> to vector<56x56xf32>
    %133 = arith.truncf %132 : vector<56x56xf32> to vector<56x56xbf16>
    %c0_72 = arith.constant 0 : index
    %134 = arith.index_cast %c4_i32 : i32 to index
    %c0_73 = arith.constant 0 : index
    %c0_74 = arith.constant 0 : index
    %135 = vector.load %arg3[%c0_72, %134, %c0_73, %c0_74] : memref<1x8x56x56xf32, #tpu.memory_space<vmem>>, vector<1x1x56x56xf32>
    %136 = vector.shape_cast %135 : vector<1x1x56x56xf32> to vector<56x56xf32>
    %137 = arith.truncf %136 : vector<56x56xf32> to vector<56x56xbf16>
    %c0_75 = arith.constant 0 : index
    %138 = arith.index_cast %c4_i32 : i32 to index
    %c0_76 = arith.constant 0 : index
    %c0_77 = arith.constant 0 : index
    %139 = vector.load %arg4[%c0_75, %138, %c0_76, %c0_77] : memref<1x8x56x56xf32, #tpu.memory_space<vmem>>, vector<1x1x56x56xf32>
    %140 = vector.shape_cast %139 : vector<1x1x56x56xf32> to vector<56x56xf32>
    %141 = arith.truncf %140 : vector<56x56xf32> to vector<56x56xbf16>
    "tpu.trace_start"() <{level = 10 : i32, message = "qd,kd->qk"}> : () -> ()
    %cst_78 = arith.constant dense<0.000000e+00> : vector<56x56xf32>
    %142 = tpu.matmul %133, %137, %cst_78 {dimension_numbers = #tpu.dot_dimension_numbers<[1], [1], [0], [0], [0, 0, 1, 0], [], []>} : vector<56x56xbf16>, vector<56x56xbf16>, vector<56x56xf32> -> vector<56x56xf32>
    "tpu.trace_stop"() : () -> ()
    %cst_79 = arith.constant 0.133630618 : f32
    %143 = vector.broadcast %cst_79 : f32 to vector<56x56xf32>
    %144 = arith.mulf %142, %143 : vector<56x56xf32>
    %145 = arith.addf %144, %1 : vector<56x56xf32>
    %cst_80 = arith.constant dense<0xFF800000> : vector<56xf32>
    %146 = vector.multi_reduction <maximumf>, %145, %cst_80 [1] : vector<56x56xf32> to vector<56xf32>
    %147 = vector.shape_cast %146 : vector<56xf32> to vector<56x1xf32>
    %148 = vector.broadcast %147 : vector<56x1xf32> to vector<56x56xf32>
    %149 = arith.subf %145, %148 : vector<56x56xf32>
    %150 = math.exp %149 : vector<56x56xf32>
    %cst_81 = arith.constant dense<0.000000e+00> : vector<56xf32>
    %151 = vector.multi_reduction <add>, %150, %cst_81 [1] : vector<56x56xf32> to vector<56xf32>
    %152 = vector.shape_cast %151 : vector<56xf32> to vector<56x1xf32>
    %153 = tpu.reciprocal %152 {approx = true} : vector<56x1xf32> -> vector<56x1xf32>
    %154 = vector.broadcast %153 : vector<56x1xf32> to vector<56x56xf32>
    %155 = arith.mulf %150, %154 : vector<56x56xf32>
    %156 = arith.truncf %155 : vector<56x56xf32> to vector<56x56xbf16>
    "tpu.trace_start"() <{level = 10 : i32, message = "qk,kd->qd"}> : () -> ()
    %cst_82 = arith.constant dense<0.000000e+00> : vector<56x56xf32>
    %157 = tpu.matmul %156, %141, %cst_82 {dimension_numbers = #tpu.dot_dimension_numbers<[1], [0], [0], [1], [0, 0, 1, 1], [], []>} : vector<56x56xbf16>, vector<56x56xbf16>, vector<56x56xf32> -> vector<56x56xf32>
    "tpu.trace_stop"() : () -> ()
    %c0_83 = arith.constant 0 : index
    %158 = arith.index_cast %c4_i32 : i32 to index
    %c0_84 = arith.constant 0 : index
    %c0_85 = arith.constant 0 : index
    %159 = vector.load %arg6[%c0_83, %158, %c0_84, %c0_85] : memref<1x8x56x56xf32, #tpu.memory_space<vmem>>, vector<1x1x56x56xf32>
    %160 = vector.shape_cast %159 : vector<1x1x56x56xf32> to vector<56x56xf32>
    %161 = vector.shape_cast %157 : vector<56x56xf32> to vector<1x1x56x56xf32>
    tpu.vector_store %arg6[%c0_83, %158, %c0_84, %c0_85], %161 {strides = array<i32>} : memref<1x8x56x56xf32, #tpu.memory_space<vmem>>, vector<1x1x56x56xf32>,
    %c5_i32 = arith.constant 5 : i32
    %c0_86 = arith.constant 0 : index
    %162 = arith.index_cast %c5_i32 : i32 to index
    %c0_87 = arith.constant 0 : index
    %c0_88 = arith.constant 0 : index
    %163 = vector.load %arg2[%c0_86, %162, %c0_87, %c0_88] : memref<1x8x56x56xf32, #tpu.memory_space<vmem>>, vector<1x1x56x56xf32>
    %164 = vector.shape_cast %163 : vector<1x1x56x56xf32> to vector<56x56xf32>
    %165 = arith.truncf %164 : vector<56x56xf32> to vector<56x56xbf16>
    %c0_89 = arith.constant 0 : index
    %166 = arith.index_cast %c5_i32 : i32 to index
    %c0_90 = arith.constant 0 : index
    %c0_91 = arith.constant 0 : index
    %167 = vector.load %arg3[%c0_89, %166, %c0_90, %c0_91] : memref<1x8x56x56xf32, #tpu.memory_space<vmem>>, vector<1x1x56x56xf32>
    %168 = vector.shape_cast %167 : vector<1x1x56x56xf32> to vector<56x56xf32>
    %169 = arith.truncf %168 : vector<56x56xf32> to vector<56x56xbf16>
    %c0_92 = arith.constant 0 : index
    %170 = arith.index_cast %c5_i32 : i32 to index
    %c0_93 = arith.constant 0 : index
    %c0_94 = arith.constant 0 : index
    %171 = vector.load %arg4[%c0_92, %170, %c0_93, %c0_94] : memref<1x8x56x56xf32, #tpu.memory_space<vmem>>, vector<1x1x56x56xf32>
    %172 = vector.shape_cast %171 : vector<1x1x56x56xf32> to vector<56x56xf32>
    %173 = arith.truncf %172 : vector<56x56xf32> to vector<56x56xbf16>
    "tpu.trace_start"() <{level = 10 : i32, message = "qd,kd->qk"}> : () -> ()
    %cst_95 = arith.constant dense<0.000000e+00> : vector<56x56xf32>
    %174 = tpu.matmul %165, %169, %cst_95 {dimension_numbers = #tpu.dot_dimension_numbers<[1], [1], [0], [0], [0, 0, 1, 0], [], []>} : vector<56x56xbf16>, vector<56x56xbf16>, vector<56x56xf32> -> vector<56x56xf32>
    "tpu.trace_stop"() : () -> ()
    %cst_96 = arith.constant 0.133630618 : f32
    %175 = vector.broadcast %cst_96 : f32 to vector<56x56xf32>
    %176 = arith.mulf %174, %175 : vector<56x56xf32>
    %177 = arith.addf %176, %1 : vector<56x56xf32>
    %cst_97 = arith.constant dense<0xFF800000> : vector<56xf32>
    %178 = vector.multi_reduction <maximumf>, %177, %cst_97 [1] : vector<56x56xf32> to vector<56xf32>
    %179 = vector.shape_cast %178 : vector<56xf32> to vector<56x1xf32>
    %180 = vector.broadcast %179 : vector<56x1xf32> to vector<56x56xf32>
    %181 = arith.subf %177, %180 : vector<56x56xf32>
    %182 = math.exp %181 : vector<56x56xf32>
    %cst_98 = arith.constant dense<0.000000e+00> : vector<56xf32>
    %183 = vector.multi_reduction <add>, %182, %cst_98 [1] : vector<56x56xf32> to vector<56xf32>
    %184 = vector.shape_cast %183 : vector<56xf32> to vector<56x1xf32>
    %185 = tpu.reciprocal %184 {approx = true} : vector<56x1xf32> -> vector<56x1xf32>
    %186 = vector.broadcast %185 : vector<56x1xf32> to vector<56x56xf32>
    %187 = arith.mulf %182, %186 : vector<56x56xf32>
    %188 = arith.truncf %187 : vector<56x56xf32> to vector<56x56xbf16>
    "tpu.trace_start"() <{level = 10 : i32, message = "qk,kd->qd"}> : () -> ()
    %cst_99 = arith.constant dense<0.000000e+00> : vector<56x56xf32>
    %189 = tpu.matmul %188, %173, %cst_99 {dimension_numbers = #tpu.dot_dimension_numbers<[1], [0], [0], [1], [0, 0, 1, 1], [], []>} : vector<56x56xbf16>, vector<56x56xbf16>, vector<56x56xf32> -> vector<56x56xf32>
    "tpu.trace_stop"() : () -> ()
    %c0_100 = arith.constant 0 : index
    %190 = arith.index_cast %c5_i32 : i32 to index
    %c0_101 = arith.constant 0 : index
    %c0_102 = arith.constant 0 : index
    %191 = vector.load %arg6[%c0_100, %190, %c0_101, %c0_102] : memref<1x8x56x56xf32, #tpu.memory_space<vmem>>, vector<1x1x56x56xf32>
    %192 = vector.shape_cast %191 : vector<1x1x56x56xf32> to vector<56x56xf32>
    %193 = vector.shape_cast %189 : vector<56x56xf32> to vector<1x1x56x56xf32>
    tpu.vector_store %arg6[%c0_100, %190, %c0_101, %c0_102], %193 {strides = array<i32>} : memref<1x8x56x56xf32, #tpu.memory_space<vmem>>, vector<1x1x56x56xf32>,
    %c6_i32 = arith.constant 6 : i32
    %c0_103 = arith.constant 0 : index
    %194 = arith.index_cast %c6_i32 : i32 to index
    %c0_104 = arith.constant 0 : index
    %c0_105 = arith.constant 0 : index
    %195 = vector.load %arg2[%c0_103, %194, %c0_104, %c0_105] : memref<1x8x56x56xf32, #tpu.memory_space<vmem>>, vector<1x1x56x56xf32>
    %196 = vector.shape_cast %195 : vector<1x1x56x56xf32> to vector<56x56xf32>
    %197 = arith.truncf %196 : vector<56x56xf32> to vector<56x56xbf16>
    %c0_106 = arith.constant 0 : index
    %198 = arith.index_cast %c6_i32 : i32 to index
    %c0_107 = arith.constant 0 : index
    %c0_108 = arith.constant 0 : index
    %199 = vector.load %arg3[%c0_106, %198, %c0_107, %c0_108] : memref<1x8x56x56xf32, #tpu.memory_space<vmem>>, vector<1x1x56x56xf32>
    %200 = vector.shape_cast %199 : vector<1x1x56x56xf32> to vector<56x56xf32>
    %201 = arith.truncf %200 : vector<56x56xf32> to vector<56x56xbf16>
    %c0_109 = arith.constant 0 : index
    %202 = arith.index_cast %c6_i32 : i32 to index
    %c0_110 = arith.constant 0 : index
    %c0_111 = arith.constant 0 : index
    %203 = vector.load %arg4[%c0_109, %202, %c0_110, %c0_111] : memref<1x8x56x56xf32, #tpu.memory_space<vmem>>, vector<1x1x56x56xf32>
    %204 = vector.shape_cast %203 : vector<1x1x56x56xf32> to vector<56x56xf32>
    %205 = arith.truncf %204 : vector<56x56xf32> to vector<56x56xbf16>
    "tpu.trace_start"() <{level = 10 : i32, message = "qd,kd->qk"}> : () -> ()
    %cst_112 = arith.constant dense<0.000000e+00> : vector<56x56xf32>
    %206 = tpu.matmul %197, %201, %cst_112 {dimension_numbers = #tpu.dot_dimension_numbers<[1], [1], [0], [0], [0, 0, 1, 0], [], []>} : vector<56x56xbf16>, vector<56x56xbf16>, vector<56x56xf32> -> vector<56x56xf32>
    "tpu.trace_stop"() : () -> ()
    %cst_113 = arith.constant 0.133630618 : f32
    %207 = vector.broadcast %cst_113 : f32 to vector<56x56xf32>
    %208 = arith.mulf %206, %207 : vector<56x56xf32>
    %209 = arith.addf %208, %1 : vector<56x56xf32>
    %cst_114 = arith.constant dense<0xFF800000> : vector<56xf32>
    %210 = vector.multi_reduction <maximumf>, %209, %cst_114 [1] : vector<56x56xf32> to vector<56xf32>
    %211 = vector.shape_cast %210 : vector<56xf32> to vector<56x1xf32>
    %212 = vector.broadcast %211 : vector<56x1xf32> to vector<56x56xf32>
    %213 = arith.subf %209, %212 : vector<56x56xf32>
    %214 = math.exp %213 : vector<56x56xf32>
    %cst_115 = arith.constant dense<0.000000e+00> : vector<56xf32>
    %215 = vector.multi_reduction <add>, %214, %cst_115 [1] : vector<56x56xf32> to vector<56xf32>
    %216 = vector.shape_cast %215 : vector<56xf32> to vector<56x1xf32>
    %217 = tpu.reciprocal %216 {approx = true} : vector<56x1xf32> -> vector<56x1xf32>
    %218 = vector.broadcast %217 : vector<56x1xf32> to vector<56x56xf32>
    %219 = arith.mulf %214, %218 : vector<56x56xf32>
    %220 = arith.truncf %219 : vector<56x56xf32> to vector<56x56xbf16>
    "tpu.trace_start"() <{level = 10 : i32, message = "qk,kd->qd"}> : () -> ()
    %cst_116 = arith.constant dense<0.000000e+00> : vector<56x56xf32>
    %221 = tpu.matmul %220, %205, %cst_116 {dimension_numbers = #tpu.dot_dimension_numbers<[1], [0], [0], [1], [0, 0, 1, 1], [], []>} : vector<56x56xbf16>, vector<56x56xbf16>, vector<56x56xf32> -> vector<56x56xf32>
    "tpu.trace_stop"() : () -> ()
    %c0_117 = arith.constant 0 : index
    %222 = arith.index_cast %c6_i32 : i32 to index
    %c0_118 = arith.constant 0 : index
    %c0_119 = arith.constant 0 : index
    %223 = vector.load %arg6[%c0_117, %222, %c0_118, %c0_119] : memref<1x8x56x56xf32, #tpu.memory_space<vmem>>, vector<1x1x56x56xf32>
    %224 = vector.shape_cast %223 : vector<1x1x56x56xf32> to vector<56x56xf32>
    %225 = vector.shape_cast %221 : vector<56x56xf32> to vector<1x1x56x56xf32>
    tpu.vector_store %arg6[%c0_117, %222, %c0_118, %c0_119], %225 {strides = array<i32>} : memref<1x8x56x56xf32, #tpu.memory_space<vmem>>, vector<1x1x56x56xf32>,
    %c7_i32 = arith.constant 7 : i32
    %c0_120 = arith.constant 0 : index
    %226 = arith.index_cast %c7_i32 : i32 to index
    %c0_121 = arith.constant 0 : index
    %c0_122 = arith.constant 0 : index
    %227 = vector.load %arg2[%c0_120, %226, %c0_121, %c0_122] : memref<1x8x56x56xf32, #tpu.memory_space<vmem>>, vector<1x1x56x56xf32>
    %228 = vector.shape_cast %227 : vector<1x1x56x56xf32> to vector<56x56xf32>
    %229 = arith.truncf %228 : vector<56x56xf32> to vector<56x56xbf16>
    %c0_123 = arith.constant 0 : index
    %230 = arith.index_cast %c7_i32 : i32 to index
    %c0_124 = arith.constant 0 : index
    %c0_125 = arith.constant 0 : index
    %231 = vector.load %arg3[%c0_123, %230, %c0_124, %c0_125] : memref<1x8x56x56xf32, #tpu.memory_space<vmem>>, vector<1x1x56x56xf32>
    %232 = vector.shape_cast %231 : vector<1x1x56x56xf32> to vector<56x56xf32>
    %233 = arith.truncf %232 : vector<56x56xf32> to vector<56x56xbf16>
    %c0_126 = arith.constant 0 : index
    %234 = arith.index_cast %c7_i32 : i32 to index
    %c0_127 = arith.constant 0 : index
    %c0_128 = arith.constant 0 : index
    %235 = vector.load %arg4[%c0_126, %234, %c0_127, %c0_128] : memref<1x8x56x56xf32, #tpu.memory_space<vmem>>, vector<1x1x56x56xf32>
    %236 = vector.shape_cast %235 : vector<1x1x56x56xf32> to vector<56x56xf32>
    %237 = arith.truncf %236 : vector<56x56xf32> to vector<56x56xbf16>
    "tpu.trace_start"() <{level = 10 : i32, message = "qd,kd->qk"}> : () -> ()
    %cst_129 = arith.constant dense<0.000000e+00> : vector<56x56xf32>
    %238 = tpu.matmul %229, %233, %cst_129 {dimension_numbers = #tpu.dot_dimension_numbers<[1], [1], [0], [0], [0, 0, 1, 0], [], []>} : vector<56x56xbf16>, vector<56x56xbf16>, vector<56x56xf32> -> vector<56x56xf32>
    "tpu.trace_stop"() : () -> ()
    %cst_130 = arith.constant 0.133630618 : f32
    %239 = vector.broadcast %cst_130 : f32 to vector<56x56xf32>
    %240 = arith.mulf %238, %239 : vector<56x56xf32>
    %241 = arith.addf %240, %1 : vector<56x56xf32>
    %cst_131 = arith.constant dense<0xFF800000> : vector<56xf32>
    %242 = vector.multi_reduction <maximumf>, %241, %cst_131 [1] : vector<56x56xf32> to vector<56xf32>
    %243 = vector.shape_cast %242 : vector<56xf32> to vector<56x1xf32>
    %244 = vector.broadcast %243 : vector<56x1xf32> to vector<56x56xf32>
    %245 = arith.subf %241, %244 : vector<56x56xf32>
    %246 = math.exp %245 : vector<56x56xf32>
    %cst_132 = arith.constant dense<0.000000e+00> : vector<56xf32>
    %247 = vector.multi_reduction <add>, %246, %cst_132 [1] : vector<56x56xf32> to vector<56xf32>
    %248 = vector.shape_cast %247 : vector<56xf32> to vector<56x1xf32>
    %249 = tpu.reciprocal %248 {approx = true} : vector<56x1xf32> -> vector<56x1xf32>
    %250 = vector.broadcast %249 : vector<56x1xf32> to vector<56x56xf32>
    %251 = arith.mulf %246, %250 : vector<56x56xf32>
    %252 = arith.truncf %251 : vector<56x56xf32> to vector<56x56xbf16>
    "tpu.trace_start"() <{level = 10 : i32, message = "qk,kd->qd"}> : () -> ()
    %cst_133 = arith.constant dense<0.000000e+00> : vector<56x56xf32>
    %253 = tpu.matmul %252, %237, %cst_133 {dimension_numbers = #tpu.dot_dimension_numbers<[1], [0], [0], [1], [0, 0, 1, 1], [], []>} : vector<56x56xbf16>, vector<56x56xbf16>, vector<56x56xf32> -> vector<56x56xf32>
    "tpu.trace_stop"() : () -> ()
    %c0_134 = arith.constant 0 : index
    %254 = arith.index_cast %c7_i32 : i32 to index
    %c0_135 = arith.constant 0 : index
    %c0_136 = arith.constant 0 : index
    %255 = vector.load %arg6[%c0_134, %254, %c0_135, %c0_136] : memref<1x8x56x56xf32, #tpu.memory_space<vmem>>, vector<1x1x56x56xf32>
    %256 = vector.shape_cast %255 : vector<1x1x56x56xf32> to vector<56x56xf32>
    %257 = vector.shape_cast %253 : vector<56x56xf32> to vector<1x1x56x56xf32>
    tpu.vector_store %arg6[%c0_134, %254, %c0_135, %c0_136], %257 {strides = array<i32>} : memref<1x8x56x56xf32, #tpu.memory_space<vmem>>, vector<1x1x56x56xf32>,
    %c8_i32 = arith.constant 8 : i32
    return
  }
  func.func @transform_0(%arg0: i32, %arg1: i32) -> (i32, i32, i32, i32) {
    %c0_i32 = arith.constant 0 : i32
    %c0_i32_0 = arith.constant 0 : i32
    %c0_i32_1 = arith.constant 0 : i32
    return %arg0, %arg1, %c0_i32, %c0_i32_0 : i32, i32, i32, i32
  }
  func.func @transform_1(%arg0: i32, %arg1: i32) -> (i32, i32, i32, i32) {
    %c0_i32 = arith.constant 0 : i32
    %c0_i32_0 = arith.constant 0 : i32
    %c0_i32_1 = arith.constant 0 : i32
    return %arg0, %arg1, %c0_i32, %c0_i32_0 : i32, i32, i32, i32
  }
  func.func @transform_2(%arg0: i32, %arg1: i32) -> (i32, i32, i32, i32) {
    %c0_i32 = arith.constant 0 : i32
    %c0_i32_0 = arith.constant 0 : i32
    %c0_i32_1 = arith.constant 0 : i32
    return %arg0, %arg1, %c0_i32, %c0_i32_0 : i32, i32, i32, i32
  }
  func.func @transform_3(%arg0: i32, %arg1: i32) -> (i32, i32, i32) {
    %c0_i32 = arith.constant 0 : i32
    %c0_i32_0 = arith.constant 0 : i32
    %c0_i32_1 = arith.constant 0 : i32
    return %arg0, %c0_i32, %c0_i32_0 : i32, i32, i32
  }
  func.func @transform_4(%arg0: i32, %arg1: i32) -> (i32, i32, i32, i32) {
    %c0_i32 = arith.constant 0 : i32
    %c0_i32_0 = arith.constant 0 : i32
    %c0_i32_1 = arith.constant 0 : i32
    return %arg0, %arg1, %c0_i32, %c0_i32_0 : i32, i32, i32, i32
  }
}

</mosaic_0001>

<llo_original>
// kernel: masked_attention.1
$region0: #{masked_attention.1}
  #allocation0 [shape = 'u32[]', space=smem, size = 0x4, offset = 0x4, fixed_abs, tag = 'smem constant byte address 0x4 - core index']
  #allocation1 [shape = 'u32[72,128]{1,0:T(1,128)}', space=vmem, size = 0x9000, scoped, tag = 'internal scratch']
  %s0 = inlined_call_operand.hbm [shape: f32[1,8,56,56], index: 0, kind: input, shape index: {}]
  %s1 = inlined_call_operand.hbm [shape: f32[1,8,56,56], index: 1, kind: input, shape index: {}]
  %s2 = inlined_call_operand.hbm [shape: f32[1,8,56,56], index: 2, kind: input, shape index: {}]
  %s3 = inlined_call_operand.hbm [shape: f32[1,56,56], index: 3, kind: input, shape index: {}]
  %s4 = inlined_call_operand.hbm [shape: f32[1,8,56,56], index: 4, kind: output, shape index: {}]
  %s5 = sld [smem:[#allocation0]]
  $region42: #{masked_attention.1} parent=0
    _
  %s7 = ssub.s32 1, %s5
  %s8 = scalar_select 0, %s7, %s5
  $region1: #{masked_attention.1} parent=0
    #allocation2 [shape = 'u8[229376]{0}', space=vmem, size = 0x38000, scoped, tag = 'input window, operand 0, single buffered']
    #allocation3 [shape = 's32[1]{0}', space=sflag, size = 0x4, scoped, tag = 'scoped memory for masked_attention.1']
    #allocation4 [shape = 's32[1]{0}', space=sflag, size = 0x4, scoped, tag = 'scoped memory for masked_attention.1']
    #allocation5 [shape = 'u8[229376]{0}', space=vmem, size = 0x38000, scoped, tag = 'input window, operand 1, single buffered']
    #allocation6 [shape = 's32[1]{0}', space=sflag, size = 0x4, scoped, tag = 'scoped memory for masked_attention.1']
    #allocation7 [shape = 'u8[229376]{0}', space=vmem, size = 0x38000, scoped, tag = 'input window, operand 2, single buffered']
    #allocation8 [shape = 'u8[28672]{0}', space=vmem, size = 0x7000, scoped, tag = 'input window, operand 3, single buffered']
    #allocation9 [shape = 's32[1]{0}', space=sflag, size = 0x4, scoped, tag = 'scoped memory for masked_attention.1']
    #allocation10 [shape = 'u8[229376]{0}', space=vmem, size = 0x38000, scoped, tag = 'output window, operand 0, single buffered']
    %9 = vsyncpa [#allocation3], 0
    %10 = vsyncpa [#allocation6], 0
    %11 = vsyncpa [#allocation9], 0
    %12 = vsyncpa [#allocation4], 0
    // Predicated region
    $region2: #{masked_attention.1} parent=1 // pred_check
      _
    $region3: #{masked_attention.1} parent=1 // pred_check_branch
      %14 = sbr.rel (0) target = $region5
    $region4: #{masked_attention.1} parent=1 // pred_region
      %16 = vsyncadd [#allocation3], 0
      %s17 = sshll.u32 %s0, 4
      %s18 = int_to_ptr.hbm [resolvable:$true] %s17
      %s19 = sshll.u32 [#allocation2], 4
      %s20 = int_to_ptr.vmem [resolvable:$true] %s19
      %25 = dma.hbm_to_vmem [thread:$0]  %s18, 7168, %s20, [#allocation3], 128, 128, 8
    $region5: #{masked_attention.1} parent=1 // pred_fallthru
      _
    // Predicated region
    $region6: #{masked_attention.1} parent=1 // pred_check
      _
    $region7: #{masked_attention.1} parent=1 // pred_check_branch
      %27 = sbr.rel (0) target = $region9
    $region8: #{masked_attention.1} parent=1 // pred_region
      %29 = vsyncadd [#allocation6], 0
      %s30 = sshll.u32 %s1, 4
      %s31 = int_to_ptr.hbm [resolvable:$true] %s30
      %s32 = sshll.u32 [#allocation5], 4
      %s33 = int_to_ptr.vmem [resolvable:$true] %s32
      %38 = dma.hbm_to_vmem [thread:$0]  %s31, 7168, %s33, [#allocation6], 128, 128, 8
    $region9: #{masked_attention.1} parent=1 // pred_fallthru
      _
    // Predicated region
    $region10: #{masked_attention.1} parent=1 // pred_check
      _
    $region11: #{masked_attention.1} parent=1 // pred_check_branch
      %40 = sbr.rel (0) target = $region13
    $region12: #{masked_attention.1} parent=1 // pred_region
      %42 = vsyncadd [#allocation6], 0
      %s43 = sshll.u32 %s2, 4
      %s44 = int_to_ptr.hbm [resolvable:$true] %s43
      %s45 = sshll.u32 [#allocation7], 4
      %s46 = int_to_ptr.vmem [resolvable:$true] %s45
      %51 = dma.hbm_to_vmem [thread:$0]  %s44, 7168, %s46, [#allocation6], 128, 128, 8
    $region13: #{masked_attention.1} parent=1 // pred_fallthru
      _
    // Predicated region
    $region14: #{masked_attention.1} parent=1 // pred_check
      _
    $region15: #{masked_attention.1} parent=1 // pred_check_branch
      %53 = sbr.rel (0) target = $region17
    $region16: #{masked_attention.1} parent=1 // pred_region
      %55 = vsyncadd [#allocation9], 0
      %s56 = sshll.u32 %s3, 4
      %s57 = int_to_ptr.hbm [resolvable:$true] %s56
      %s58 = sshll.u32 [#allocation8], 4
      %s59 = int_to_ptr.vmem [resolvable:$true] %s58
      %64 = dma.hbm_to_vmem [thread:$0]  %s57, 896, %s59, [#allocation9], 128, 128, 8
    $region17: #{masked_attention.1} parent=1 // pred_fallthru
      _
    // Predicated region
    $region18: #{masked_attention.1} parent=1 // pred_check
      _
    $region19: #{masked_attention.1} parent=1 // pred_check_branch
      %66 = sbr.rel (0) target = $region21
    $region20: #{masked_attention.1} parent=1 // pred_region
      %68 = dma.done [#allocation3], 7168
    $region21: #{masked_attention.1} parent=1 // pred_fallthru
      _
    // Predicated region
    $region22: #{masked_attention.1} parent=1 // pred_check
      _
    $region23: #{masked_attention.1} parent=1 // pred_check_branch
      %70 = sbr.rel (0) target = $region25
    $region24: #{masked_attention.1} parent=1 // pred_region
      %72 = dma.done [#allocation6], 7168
    $region25: #{masked_attention.1} parent=1 // pred_fallthru
      _
    // Predicated region
    $region26: #{masked_attention.1} parent=1 // pred_check
      _
    $region27: #{masked_attention.1} parent=1 // pred_check_branch
      %74 = sbr.rel (0) target = $region29
    $region28: #{masked_attention.1} parent=1 // pred_region
      %76 = dma.done [#allocation6], 7168
    $region29: #{masked_attention.1} parent=1 // pred_fallthru
      _
    // Predicated region
    $region30: #{masked_attention.1} parent=1 // pred_check
      _
    $region31: #{masked_attention.1} parent=1 // pred_check_branch
      %78 = sbr.rel (0) target = $region33
    $region32: #{masked_attention.1} parent=1 // pred_region
      %80 = dma.done [#allocation9], 896
    $region33: #{masked_attention.1} parent=1 // pred_fallthru
      _
    %v82 = vld [vmem:[#allocation8] sm:$0xff]
    %v83 = vld [vmem:[#allocation8 + $0x8] sm:$0xff]
    %v84 = vld [vmem:[#allocation8 + $0x10] sm:$0xff]
    %v85 = vld [vmem:[#allocation8 + $0x18] sm:$0xff]
    %v86 = vld [vmem:[#allocation8 + $0x20] sm:$0xff]
    %v87 = vld [vmem:[#allocation8 + $0x28] sm:$0xff]
    %v88 = vld [vmem:[#allocation8 + $0x30] sm:$0xff]
    %v89 = vld [vmem:[#allocation2] sm:$0xff]
    %v90 = vld [vmem:[#allocation2 + $0x8] sm:$0xff]
    %v91 = vld [vmem:[#allocation2 + $0x10] sm:$0xff]
    %v92 = vld [vmem:[#allocation2 + $0x18] sm:$0xff]
    %v93 = vld [vmem:[#allocation2 + $0x20] sm:$0xff]
    %v94 = vld [vmem:[#allocation2 + $0x28] sm:$0xff]
    %v95 = vld [vmem:[#allocation2 + $0x30] sm:$0xff]
    %v96 = vpack.c.bf16 %v90, %v89
    %v97 = vpack.c.bf16 %v92, %v91
    %v98 = vpack.c.bf16 %v94, %v93
    %v99 = vpack.c.bf16 %v95, %v95
    %v100 = vld [vmem:[#allocation5] sm:$0xff]
    %v101 = vld [vmem:[#allocation5 + $0x8] sm:$0xff]
    %v102 = vld [vmem:[#allocation5 + $0x10] sm:$0xff]
    %v103 = vld [vmem:[#allocation5 + $0x18] sm:$0xff]
    %v104 = vld [vmem:[#allocation5 + $0x20] sm:$0xff]
    %v105 = vld [vmem:[#allocation5 + $0x28] sm:$0xff]
    %v106 = vld [vmem:[#allocation5 + $0x30] sm:$0xff]
    %v107 = vpack.c.bf16 %v101, %v100
    %v108 = vpack.c.bf16 %v103, %v102
    %v109 = vpack.c.bf16 %v105, %v104
    %v110 = vpack.c.bf16 %v106, %v106
    %v111 = vld [vmem:[#allocation7] sm:$0xff]
    %v112 = vld [vmem:[#allocation7 + $0x8] sm:$0xff]
    %v113 = vld [vmem:[#allocation7 + $0x10] sm:$0xff]
    %v114 = vld [vmem:[#allocation7 + $0x18] sm:$0xff]
    %v115 = vld [vmem:[#allocation7 + $0x20] sm:$0xff]
    %v116 = vld [vmem:[#allocation7 + $0x28] sm:$0xff]
    %v117 = vld [vmem:[#allocation7 + $0x30] sm:$0xff]
    %v118 = vpack.c.bf16 %v112, %v111
    %v119 = vpack.c.bf16 %v114, %v113
    %v120 = vpack.c.bf16 %v116, %v115
    %v121 = vpack.c.bf16 %v117, %v117
    %vm122 = vcmask 457728
    %v124 = vsel %vm122, %v96, 0
    %v127 = vsel %vm122, %v97, 0
    %v130 = vsel %vm122, %v98, 0
    %v133 = vsel %vm122, %v99, 0
    %v136 = vsel %vm122, %v107, 0
    %v139 = vsel %vm122, %v108, 0
    %v142 = vsel %vm122, %v109, 0
    %v145 = vsel %vm122, %v110, 0
    %147 = vmatpush.bf16.xpose.msra.mxu0 0
    %148 = vmatpush.bf16.xpose.msra.mxu0 0
    %149 = vmatpush.bf16.xpose.msra.mxu0 0
    %150 = vmatpush.bf16.xpose.msra.mxu0 0
    %151 = vmatpush.bf16.xpose.msra.mxu0 %v145
    %152 = vmatpush.bf16.xpose.msra.mxu0 %v142
    %153 = vmatpush.bf16.xpose.msra.mxu0 %v139
    %154 = vmatpush.bf16.xpose.msra.mxu0 %v136
    %155 = vmatmul.bf16.gmra.mxu0 %v124
    %v156 = vpop.f32.mrf.mxu0
    %v157 = vadd.f32 0.0, %v156
    %v158 = vpop.f32.mrf.mxu0
    %v159 = vadd.f32 0.0, %v158
    %160 = vmatmul.bf16.gmra.mxu0 %v127
    %v161 = vpop.f32.mrf.mxu0
    %v162 = vadd.f32 0.0, %v161
    %v163 = vpop.f32.mrf.mxu0
    %v164 = vadd.f32 0.0, %v163
    %165 = vmatmul.bf16.gmra.mxu0 %v130
    %v166 = vpop.f32.mrf.mxu0
    %v167 = vadd.f32 0.0, %v166
    %v168 = vpop.f32.mrf.mxu0
    %v169 = vadd.f32 0.0, %v168
    %170 = vmatmul.bf16.gmra.mxu0 %v133
    %v171 = vpop.f32.mrf.mxu0
    %v172 = vadd.f32 0.0, %v171
    %v173 = vpop.f32.mrf.mxu0
    %174 = vdwg.mxu0
    %v175 = vmul.f32 %v157, 0.13363062
    %v176 = vmul.f32 %v159, 0.13363062
    %v177 = vmul.f32 %v162, 0.13363062
    %v178 = vmul.f32 %v164, 0.13363062
    %v179 = vmul.f32 %v167, 0.13363062
    %v180 = vmul.f32 %v169, 0.13363062
    %v181 = vmul.f32 %v172, 0.13363062
    %v182 = vadd.f32 %v175, %v82
    %v183 = vadd.f32 %v176, %v83
    %v184 = vadd.f32 %v177, %v84
    %v185 = vadd.f32 %v178, %v85
    %v186 = vadd.f32 %v179, %v86
    %v187 = vadd.f32 %v180, %v87
    %v188 = vadd.f32 %v181, %v88
    %v189 = vsel %vm122, %v182, -inf
    %190 = vmax.xlane.f32.xlu0 %v189
    %v191 = vpop.xlane.xlu0 %190
    %v192 = vsel %vm122, %v183, -inf
    %193 = vmax.xlane.f32.xlu0 %v192
    %v194 = vpop.xlane.xlu0 %193
    %v195 = vsel %vm122, %v184, -inf
    %196 = vmax.xlane.f32.xlu0 %v195
    %v197 = vpop.xlane.xlu0 %196
    %v198 = vsel %vm122, %v185, -inf
    %199 = vmax.xlane.f32.xlu0 %v198
    %v200 = vpop.xlane.xlu0 %199
    %v201 = vsel %vm122, %v186, -inf
    %202 = vmax.xlane.f32.xlu0 %v201
    %v203 = vpop.xlane.xlu0 %202
    %v204 = vsel %vm122, %v187, -inf
    %205 = vmax.xlane.f32.xlu0 %v204
    %v206 = vpop.xlane.xlu0 %205
    %v207 = vsel %vm122, %v188, -inf
    %208 = vmax.xlane.f32.xlu0 %v207
    %v209 = vpop.xlane.xlu0 %208
    %v210 = vsub.f32 %v182, %v191
    %v211 = vsub.f32 %v183, %v194
    %v212 = vsub.f32 %v184, %v197
    %v213 = vsub.f32 %v185, %v200
    %v214 = vsub.f32 %v186, %v203
    %v215 = vsub.f32 %v187, %v206
    %v216 = vsub.f32 %v188, %v209
    %v217 = vmul.f32 %v210, 1.442695
    %v218 = vpow.pop %v217
    %v219 = vmul.f32 %v211, 1.442695
    %v220 = vpow.pop %v219
    %v221 = vmul.f32 %v212, 1.442695
    %v222 = vpow.pop %v221
    %v223 = vmul.f32 %v213, 1.442695
    %v224 = vpow.pop %v223
    %v225 = vmul.f32 %v214, 1.442695
    %v226 = vpow.pop %v225
    %v227 = vmul.f32 %v215, 1.442695
    %v228 = vpow.pop %v227
    %v229 = vmul.f32 %v216, 1.442695
    %v230 = vpow.pop %v229
    %v231 = vsel %vm122, %v218, 0.0
    %232 = vadd.xlane.f32.xlu0 %v231
    %v233 = vpop.xlane.xlu0 %232
    %v234 = vsel %vm122, %v220, 0.0
    %235 = vadd.xlane.f32.xlu0 %v234
    %v236 = vpop.xlane.xlu0 %235
    %v237 = vsel %vm122, %v222, 0.0
    %238 = vadd.xlane.f32.xlu0 %v237
    %v239 = vpop.xlane.xlu0 %238
    %v240 = vsel %vm122, %v224, 0.0
    %241 = vadd.xlane.f32.xlu0 %v240
    %v242 = vpop.xlane.xlu0 %241
    %v243 = vsel %vm122, %v226, 0.0
    %244 = vadd.xlane.f32.xlu0 %v243
    %v245 = vpop.xlane.xlu0 %244
    %v246 = vsel %vm122, %v228, 0.0
    %247 = vadd.xlane.f32.xlu0 %v246
    %v248 = vpop.xlane.xlu0 %247
    %v249 = vsel %vm122, %v230, 0.0
    %250 = vadd.xlane.f32.xlu0 %v249
    %v251 = vpop.xlane.xlu0 %250
    %v252 = vrcp.pop %v233
    %v253 = vrcp.pop %v236
    %v254 = vrcp.pop %v239
    %v255 = vrcp.pop %v242
    %v256 = vrcp.pop %v245
    %v257 = vrcp.pop %v248
    %v258 = vrcp.pop %v251
    %v259 = vmul.f32 %v218, %v252
    %v260 = vmul.f32 %v220, %v253
    %v261 = vmul.f32 %v222, %v254
    %v262 = vmul.f32 %v224, %v255
    %v263 = vmul.f32 %v226, %v256
    %v264 = vmul.f32 %v228, %v257
    %v265 = vmul.f32 %v230, %v258
    %v266 = vpack.c.bf16 %v260, %v259
    %v267 = vpack.c.bf16 %v262, %v261
    %v268 = vpack.c.bf16 %v264, %v263
    %v269 = vpack.c.bf16 %v265, %v265
    %v271 = vsel %vm122, %v266, 0
    %v274 = vsel %vm122, %v267, 0
    %v277 = vsel %vm122, %v268, 0
    %v280 = vsel %vm122, %v269, 0
    %vm282 = vcmask 1043456
    %v284 = vsel %vm282, %v121, 0
    %286 = vmatpush.bf16.msra.mxu0 0
    %287 = vmatpush.bf16.msra.mxu0 0
    %288 = vmatpush.bf16.msra.mxu0 0
    %289 = vmatpush.bf16.msra.mxu0 0
    %290 = vmatpush.bf16.msra.mxu0 %v284
    %291 = vmatpush.bf16.msra.mxu0 %v120
    %292 = vmatpush.bf16.msra.mxu0 %v119
    %293 = vmatpush.bf16.msra.mxu0 %v118
    %294 = vmatmul.bf16.gmra.mxu0 %v271
    %v295 = vpop.f32.mrf.mxu0
    %v296 = vadd.f32 0.0, %v295
    %v297 = vpop.f32.mrf.mxu0
    %v298 = vadd.f32 0.0, %v297
    %299 = vmatmul.bf16.gmra.mxu0 %v274
    %v300 = vpop.f32.mrf.mxu0
    %v301 = vadd.f32 0.0, %v300
    %v302 = vpop.f32.mrf.mxu0
    %v303 = vadd.f32 0.0, %v302
    %304 = vmatmul.bf16.gmra.mxu0 %v277
    %v305 = vpop.f32.mrf.mxu0
    %v306 = vadd.f32 0.0, %v305
    %v307 = vpop.f32.mrf.mxu0
    %v308 = vadd.f32 0.0, %v307
    %309 = vmatmul.bf16.gmra.mxu0 %v280
    %v310 = vpop.f32.mrf.mxu0
    %v311 = vadd.f32 0.0, %v310
    %v312 = vpop.f32.mrf.mxu0
    %313 = vdwg.mxu0
    %314 = vst.msk [vmem:[#allocation10] sm:$0xff] %vm122, %v296
    %315 = vst.msk [vmem:[#allocation10 + $0x8] sm:$0xff] %vm122, %v298
    %316 = vst.msk [vmem:[#allocation10 + $0x10] sm:$0xff] %vm122, %v301
    %317 = vst.msk [vmem:[#allocation10 + $0x18] sm:$0xff] %vm122, %v303
    %318 = vst.msk [vmem:[#allocation10 + $0x20] sm:$0xff] %vm122, %v306
    %319 = vst.msk [vmem:[#allocation10 + $0x28] sm:$0xff] %vm122, %v308
    %320 = vst.msk [vmem:[#allocation10 + $0x30] sm:$0xff] %vm122, %v311
    %s321 = scalar_lea.vmem [#allocation2], 56
    %v322 = vld [vmem:[%s321] sm:$0xff]
    %v323 = vld [vmem:[%s321 + $0x8] sm:$0xff]
    %v324 = vld [vmem:[%s321 + $0x10] sm:$0xff]
    %v325 = vld [vmem:[%s321 + $0x18] sm:$0xff]
    %v326 = vld [vmem:[%s321 + $0x20] sm:$0xff]
    %v327 = vld [vmem:[%s321 + $0x28] sm:$0xff]
    %v328 = vld [vmem:[%s321 + $0x30] sm:$0xff]
    %v329 = vpack.c.bf16 %v323, %v322
    %v330 = vpack.c.bf16 %v325, %v324
    %v331 = vpack.c.bf16 %v327, %v326
    %v332 = vpack.c.bf16 %v328, %v328
    %s333 = scalar_lea.vmem [#allocation5], 56
    %v334 = vld [vmem:[%s333] sm:$0xff]
    %v335 = vld [vmem:[%s333 + $0x8] sm:$0xff]
    %v336 = vld [vmem:[%s333 + $0x10] sm:$0xff]
    %v337 = vld [vmem:[%s333 + $0x18] sm:$0xff]
    %v338 = vld [vmem:[%s333 + $0x20] sm:$0xff]
    %v339 = vld [vmem:[%s333 + $0x28] sm:$0xff]
    %v340 = vld [vmem:[%s333 + $0x30] sm:$0xff]
    %v341 = vpack.c.bf16 %v335, %v334
    %v342 = vpack.c.bf16 %v337, %v336
    %v343 = vpack.c.bf16 %v339, %v338
    %v344 = vpack.c.bf16 %v340, %v340
    %s345 = scalar_lea.vmem [#allocation7], 56
    %v346 = vld [vmem:[%s345] sm:$0xff]
    %v347 = vld [vmem:[%s345 + $0x8] sm:$0xff]
    %v348 = vld [vmem:[%s345 + $0x10] sm:$0xff]
    %v349 = vld [vmem:[%s345 + $0x18] sm:$0xff]
    %v350 = vld [vmem:[%s345 + $0x20] sm:$0xff]
    %v351 = vld [vmem:[%s345 + $0x28] sm:$0xff]
    %v352 = vld [vmem:[%s345 + $0x30] sm:$0xff]
    %v353 = vpack.c.bf16 %v347, %v346
    %v354 = vpack.c.bf16 %v349, %v348
    %v355 = vpack.c.bf16 %v351, %v350
    %v356 = vpack.c.bf16 %v352, %v352
    %v358 = vsel %vm122, %v329, 0
    %v361 = vsel %vm122, %v330, 0
    %v364 = vsel %vm122, %v331, 0
    %v367 = vsel %vm122, %v332, 0
    %v370 = vsel %vm122, %v341, 0
    %v373 = vsel %vm122, %v342, 0
    %v376 = vsel %vm122, %v343, 0
    %v379 = vsel %vm122, %v344, 0
    %381 = vmatpush.bf16.xpose.msra.mxu0 0
    %382 = vmatpush.bf16.xpose.msra.mxu0 0
    %383 = vmatpush.bf16.xpose.msra.mxu0 0
    %384 = vmatpush.bf16.xpose.msra.mxu0 0
    %385 = vmatpush.bf16.xpose.msra.mxu0 %v379
    %386 = vmatpush.bf16.xpose.msra.mxu0 %v376
    %387 = vmatpush.bf16.xpose.msra.mxu0 %v373
    %388 = vmatpush.bf16.xpose.msra.mxu0 %v370
    %389 = vmatmul.bf16.gmra.mxu0 %v358
    %v390 = vpop.f32.mrf.mxu0
    %v391 = vadd.f32 0.0, %v390
    %v392 = vpop.f32.mrf.mxu0
    %v393 = vadd.f32 0.0, %v392
    %394 = vmatmul.bf16.gmra.mxu0 %v361
    %v395 = vpop.f32.mrf.mxu0
    %v396 = vadd.f32 0.0, %v395
    %v397 = vpop.f32.mrf.mxu0
    %v398 = vadd.f32 0.0, %v397
    %399 = vmatmul.bf16.gmra.mxu0 %v364
    %v400 = vpop.f32.mrf.mxu0
    %v401 = vadd.f32 0.0, %v400
    %v402 = vpop.f32.mrf.mxu0
    %v403 = vadd.f32 0.0, %v402
    %404 = vmatmul.bf16.gmra.mxu0 %v367
    %v405 = vpop.f32.mrf.mxu0
    %v406 = vadd.f32 0.0, %v405
    %v407 = vpop.f32.mrf.mxu0
    %408 = vdwg.mxu0
    %v409 = vmul.f32 %v391, 0.13363062
    %v410 = vmul.f32 %v393, 0.13363062
    %v411 = vmul.f32 %v396, 0.13363062
    %v412 = vmul.f32 %v398, 0.13363062
    %v413 = vmul.f32 %v401, 0.13363062
    %v414 = vmul.f32 %v403, 0.13363062
    %v415 = vmul.f32 %v406, 0.13363062
    %v416 = vadd.f32 %v409, %v82
    %v417 = vadd.f32 %v410, %v83
    %v418 = vadd.f32 %v411, %v84
    %v419 = vadd.f32 %v412, %v85
    %v420 = vadd.f32 %v413, %v86
    %v421 = vadd.f32 %v414, %v87
    %v422 = vadd.f32 %v415, %v88
    %v423 = vsel %vm122, %v416, -inf
    %424 = vmax.xlane.f32.xlu0 %v423
    %v425 = vpop.xlane.xlu0 %424
    %v426 = vsel %vm122, %v417, -inf
    %427 = vmax.xlane.f32.xlu0 %v426
    %v428 = vpop.xlane.xlu0 %427
    %v429 = vsel %vm122, %v418, -inf
    %430 = vmax.xlane.f32.xlu0 %v429
    %v431 = vpop.xlane.xlu0 %430
    %v432 = vsel %vm122, %v419, -inf
    %433 = vmax.xlane.f32.xlu0 %v432
    %v434 = vpop.xlane.xlu0 %433
    %v435 = vsel %vm122, %v420, -inf
    %436 = vmax.xlane.f32.xlu0 %v435
    %v437 = vpop.xlane.xlu0 %436
    %v438 = vsel %vm122, %v421, -inf
    %439 = vmax.xlane.f32.xlu0 %v438
    %v440 = vpop.xlane.xlu0 %439
    %v441 = vsel %vm122, %v422, -inf
    %442 = vmax.xlane.f32.xlu0 %v441
    %v443 = vpop.xlane.xlu0 %442
    %v444 = vsub.f32 %v416, %v425
    %v445 = vsub.f32 %v417, %v428
    %v446 = vsub.f32 %v418, %v431
    %v447 = vsub.f32 %v419, %v434
    %v448 = vsub.f32 %v420, %v437
    %v449 = vsub.f32 %v421, %v440
    %v450 = vsub.f32 %v422, %v443
    %v451 = vmul.f32 %v444, 1.442695
    %v452 = vpow.pop %v451
    %v453 = vmul.f32 %v445, 1.442695
    %v454 = vpow.pop %v453
    %v455 = vmul.f32 %v446, 1.442695
    %v456 = vpow.pop %v455
    %v457 = vmul.f32 %v447, 1.442695
    %v458 = vpow.pop %v457
    %v459 = vmul.f32 %v448, 1.442695
    %v460 = vpow.pop %v459
    %v461 = vmul.f32 %v449, 1.442695
    %v462 = vpow.pop %v461
    %v463 = vmul.f32 %v450, 1.442695
    %v464 = vpow.pop %v463
    %v465 = vsel %vm122, %v452, 0.0
    %466 = vadd.xlane.f32.xlu0 %v465
    %v467 = vpop.xlane.xlu0 %466
    %v468 = vsel %vm122, %v454, 0.0
    %469 = vadd.xlane.f32.xlu0 %v468
    %v470 = vpop.xlane.xlu0 %469
    %v471 = vsel %vm122, %v456, 0.0
    %472 = vadd.xlane.f32.xlu0 %v471
    %v473 = vpop.xlane.xlu0 %472
    %v474 = vsel %vm122, %v458, 0.0
    %475 = vadd.xlane.f32.xlu0 %v474
    %v476 = vpop.xlane.xlu0 %475
    %v477 = vsel %vm122, %v460, 0.0
    %478 = vadd.xlane.f32.xlu0 %v477
    %v479 = vpop.xlane.xlu0 %478
    %v480 = vsel %vm122, %v462, 0.0
    %481 = vadd.xlane.f32.xlu0 %v480
    %v482 = vpop.xlane.xlu0 %481
    %v483 = vsel %vm122, %v464, 0.0
    %484 = vadd.xlane.f32.xlu0 %v483
    %v485 = vpop.xlane.xlu0 %484
    %v486 = vrcp.pop %v467
    %v487 = vrcp.pop %v470
    %v488 = vrcp.pop %v473
    %v489 = vrcp.pop %v476
    %v490 = vrcp.pop %v479
    %v491 = vrcp.pop %v482
    %v492 = vrcp.pop %v485
    %v493 = vmul.f32 %v452, %v486
    %v494 = vmul.f32 %v454, %v487
    %v495 = vmul.f32 %v456, %v488
    %v496 = vmul.f32 %v458, %v489
    %v497 = vmul.f32 %v460, %v490
    %v498 = vmul.f32 %v462, %v491
    %v499 = vmul.f32 %v464, %v492
    %v500 = vpack.c.bf16 %v494, %v493
    %v501 = vpack.c.bf16 %v496, %v495
    %v502 = vpack.c.bf16 %v498, %v497
    %v503 = vpack.c.bf16 %v499, %v499
    %v505 = vsel %vm122, %v500, 0
    %v508 = vsel %vm122, %v501, 0
    %v511 = vsel %vm122, %v502, 0
    %v514 = vsel %vm122, %v503, 0
    %v517 = vsel %vm282, %v356, 0
    %519 = vmatpush.bf16.msra.mxu0 0
    %520 = vmatpush.bf16.msra.mxu0 0
    %521 = vmatpush.bf16.msra.mxu0 0
    %522 = vmatpush.bf16.msra.mxu0 0
    %523 = vmatpush.bf16.msra.mxu0 %v517
    %524 = vmatpush.bf16.msra.mxu0 %v355
    %525 = vmatpush.bf16.msra.mxu0 %v354
    %526 = vmatpush.bf16.msra.mxu0 %v353
    %527 = vmatmul.bf16.gmra.mxu0 %v505
    %v528 = vpop.f32.mrf.mxu0
    %v529 = vadd.f32 0.0, %v528
    %v530 = vpop.f32.mrf.mxu0
    %v531 = vadd.f32 0.0, %v530
    %532 = vmatmul.bf16.gmra.mxu0 %v508
    %v533 = vpop.f32.mrf.mxu0
    %v534 = vadd.f32 0.0, %v533
    %v535 = vpop.f32.mrf.mxu0
    %v536 = vadd.f32 0.0, %v535
    %537 = vmatmul.bf16.gmra.mxu0 %v511
    %v538 = vpop.f32.mrf.mxu0
    %v539 = vadd.f32 0.0, %v538
    %v540 = vpop.f32.mrf.mxu0
    %v541 = vadd.f32 0.0, %v540
    %542 = vmatmul.bf16.gmra.mxu0 %v514
    %v543 = vpop.f32.mrf.mxu0
    %v544 = vadd.f32 0.0, %v543
    %v545 = vpop.f32.mrf.mxu0
    %546 = vdwg.mxu0
    %s547 = scalar_lea.vmem [#allocation10], 56
    %548 = vst.msk [vmem:[%s547] sm:$0xff] %vm122, %v529
    %549 = vst.msk [vmem:[%s547 + $0x8] sm:$0xff] %vm122, %v531
    %550 = vst.msk [vmem:[%s547 + $0x10] sm:$0xff] %vm122, %v534
    %551 = vst.msk [vmem:[%s547 + $0x18] sm:$0xff] %vm122, %v536
    %552 = vst.msk [vmem:[%s547 + $0x20] sm:$0xff] %vm122, %v539
    %553 = vst.msk [vmem:[%s547 + $0x28] sm:$0xff] %vm122, %v541
    %554 = vst.msk [vmem:[%s547 + $0x30] sm:$0xff] %vm122, %v544
    %s555 = scalar_lea.vmem [#allocation2], 112
    %v556 = vld [vmem:[%s555] sm:$0xff]
    %v557 = vld [vmem:[%s555 + $0x8] sm:$0xff]
    %v558 = vld [vmem:[%s555 + $0x10] sm:$0xff]
    %v559 = vld [vmem:[%s555 + $0x18] sm:$0xff]
    %v560 = vld [vmem:[%s555 + $0x20] sm:$0xff]
    %v561 = vld [vmem:[%s555 + $0x28] sm:$0xff]
    %v562 = vld [vmem:[%s555 + $0x30] sm:$0xff]
    %v563 = vpack.c.bf16 %v557, %v556
    %v564 = vpack.c.bf16 %v559, %v558
    %v565 = vpack.c.bf16 %v561, %v560
    %v566 = vpack.c.bf16 %v562, %v562
    %s567 = scalar_lea.vmem [#allocation5], 112
    %v568 = vld [vmem:[%s567] sm:$0xff]
    %v569 = vld [vmem:[%s567 + $0x8] sm:$0xff]
    %v570 = vld [vmem:[%s567 + $0x10] sm:$0xff]
    %v571 = vld [vmem:[%s567 + $0x18] sm:$0xff]
    %v572 = vld [vmem:[%s567 + $0x20] sm:$0xff]
    %v573 = vld [vmem:[%s567 + $0x28] sm:$0xff]
    %v574 = vld [vmem:[%s567 + $0x30] sm:$0xff]
    %v575 = vpack.c.bf16 %v569, %v568
    %v576 = vpack.c.bf16 %v571, %v570
    %v577 = vpack.c.bf16 %v573, %v572
    %v578 = vpack.c.bf16 %v574, %v574
    %s579 = scalar_lea.vmem [#allocation7], 112
    %v580 = vld [vmem:[%s579] sm:$0xff]
    %v581 = vld [vmem:[%s579 + $0x8] sm:$0xff]
    %v582 = vld [vmem:[%s579 + $0x10] sm:$0xff]
    %v583 = vld [vmem:[%s579 + $0x18] sm:$0xff]
    %v584 = vld [vmem:[%s579 + $0x20] sm:$0xff]
    %v585 = vld [vmem:[%s579 + $0x28] sm:$0xff]
    %v586 = vld [vmem:[%s579 + $0x30] sm:$0xff]
    %v587 = vpack.c.bf16 %v581, %v580
    %v588 = vpack.c.bf16 %v583, %v582
    %v589 = vpack.c.bf16 %v585, %v584
    %v590 = vpack.c.bf16 %v586, %v586
    %v592 = vsel %vm122, %v563, 0
    %v595 = vsel %vm122, %v564, 0
    %v598 = vsel %vm122, %v565, 0
    %v601 = vsel %vm122, %v566, 0
    %v604 = vsel %vm122, %v575, 0
    %v607 = vsel %vm122, %v576, 0
    %v610 = vsel %vm122, %v577, 0
    %v613 = vsel %vm122, %v578, 0
    %615 = vmatpush.bf16.xpose.msra.mxu0 0
    %616 = vmatpush.bf16.xpose.msra.mxu0 0
    %617 = vmatpush.bf16.xpose.msra.mxu0 0
    %618 = vmatpush.bf16.xpose.msra.mxu0 0
    %619 = vmatpush.bf16.xpose.msra.mxu0 %v613
    %620 = vmatpush.bf16.xpose.msra.mxu0 %v610
    %621 = vmatpush.bf16.xpose.msra.mxu0 %v607
    %622 = vmatpush.bf16.xpose.msra.mxu0 %v604
    %623 = vmatmul.bf16.gmra.mxu0 %v592
    %v624 = vpop.f32.mrf.mxu0
    %v625 = vadd.f32 0.0, %v624
    %v626 = vpop.f32.mrf.mxu0
    %v627 = vadd.f32 0.0, %v626
    %628 = vmatmul.bf16.gmra.mxu0 %v595
    %v629 = vpop.f32.mrf.mxu0
    %v630 = vadd.f32 0.0, %v629
    %v631 = vpop.f32.mrf.mxu0
    %v632 = vadd.f32 0.0, %v631
    %633 = vmatmul.bf16.gmra.mxu0 %v598
    %v634 = vpop.f32.mrf.mxu0
    %v635 = vadd.f32 0.0, %v634
    %v636 = vpop.f32.mrf.mxu0
    %v637 = vadd.f32 0.0, %v636
    %638 = vmatmul.bf16.gmra.mxu0 %v601
    %v639 = vpop.f32.mrf.mxu0
    %v640 = vadd.f32 0.0, %v639
    %v641 = vpop.f32.mrf.mxu0
    %642 = vdwg.mxu0
    %v643 = vmul.f32 %v625, 0.13363062
    %v644 = vmul.f32 %v627, 0.13363062
    %v645 = vmul.f32 %v630, 0.13363062
    %v646 = vmul.f32 %v632, 0.13363062
    %v647 = vmul.f32 %v635, 0.13363062
    %v648 = vmul.f32 %v637, 0.13363062
    %v649 = vmul.f32 %v640, 0.13363062
    %v650 = vadd.f32 %v643, %v82
    %v651 = vadd.f32 %v644, %v83
    %v652 = vadd.f32 %v645, %v84
    %v653 = vadd.f32 %v646, %v85
    %v654 = vadd.f32 %v647, %v86
    %v655 = vadd.f32 %v648, %v87
    %v656 = vadd.f32 %v649, %v88
    %v657 = vsel %vm122, %v650, -inf
    %658 = vmax.xlane.f32.xlu0 %v657
    %v659 = vpop.xlane.xlu0 %658
    %v660 = vsel %vm122, %v651, -inf
    %661 = vmax.xlane.f32.xlu0 %v660
    %v662 = vpop.xlane.xlu0 %661
    %v663 = vsel %vm122, %v652, -inf
    %664 = vmax.xlane.f32.xlu0 %v663
    %v665 = vpop.xlane.xlu0 %664
    %v666 = vsel %vm122, %v653, -inf
    %667 = vmax.xlane.f32.xlu0 %v666
    %v668 = vpop.xlane.xlu0 %667
    %v669 = vsel %vm122, %v654, -inf
    %670 = vmax.xlane.f32.xlu0 %v669
    %v671 = vpop.xlane.xlu0 %670
    %v672 = vsel %vm122, %v655, -inf
    %673 = vmax.xlane.f32.xlu0 %v672
    %v674 = vpop.xlane.xlu0 %673
    %v675 = vsel %vm122, %v656, -inf
    %676 = vmax.xlane.f32.xlu0 %v675
    %v677 = vpop.xlane.xlu0 %676
    %v678 = vsub.f32 %v650, %v659
    %v679 = vsub.f32 %v651, %v662
    %v680 = vsub.f32 %v652, %v665
    %v681 = vsub.f32 %v653, %v668
    %v682 = vsub.f32 %v654, %v671
    %v683 = vsub.f32 %v655, %v674
    %v684 = vsub.f32 %v656, %v677
    %v685 = vmul.f32 %v678, 1.442695
    %v686 = vpow.pop %v685
    %v687 = vmul.f32 %v679, 1.442695
    %v688 = vpow.pop %v687
    %v689 = vmul.f32 %v680, 1.442695
    %v690 = vpow.pop %v689
    %v691 = vmul.f32 %v681, 1.442695
    %v692 = vpow.pop %v691
    %v693 = vmul.f32 %v682, 1.442695
    %v694 = vpow.pop %v693
    %v695 = vmul.f32 %v683, 1.442695
    %v696 = vpow.pop %v695
    %v697 = vmul.f32 %v684, 1.442695
    %v698 = vpow.pop %v697
    %v699 = vsel %vm122, %v686, 0.0
    %700 = vadd.xlane.f32.xlu0 %v699
    %v701 = vpop.xlane.xlu0 %700
    %v702 = vsel %vm122, %v688, 0.0
    %703 = vadd.xlane.f32.xlu0 %v702
    %v704 = vpop.xlane.xlu0 %703
    %v705 = vsel %vm122, %v690, 0.0
    %706 = vadd.xlane.f32.xlu0 %v705
    %v707 = vpop.xlane.xlu0 %706
    %v708 = vsel %vm122, %v692, 0.0
    %709 = vadd.xlane.f32.xlu0 %v708
    %v710 = vpop.xlane.xlu0 %709
    %v711 = vsel %vm122, %v694, 0.0
    %712 = vadd.xlane.f32.xlu0 %v711
    %v713 = vpop.xlane.xlu0 %712
    %v714 = vsel %vm122, %v696, 0.0
    %715 = vadd.xlane.f32.xlu0 %v714
    %v716 = vpop.xlane.xlu0 %715
    %v717 = vsel %vm122, %v698, 0.0
    %718 = vadd.xlane.f32.xlu0 %v717
    %v719 = vpop.xlane.xlu0 %718
    %v720 = vrcp.pop %v701
    %v721 = vrcp.pop %v704
    %v722 = vrcp.pop %v707
    %v723 = vrcp.pop %v710
    %v724 = vrcp.pop %v713
    %v725 = vrcp.pop %v716
    %v726 = vrcp.pop %v719
    %v727 = vmul.f32 %v686, %v720
    %v728 = vmul.f32 %v688, %v721
    %v729 = vmul.f32 %v690, %v722
    %v730 = vmul.f32 %v692, %v723
    %v731 = vmul.f32 %v694, %v724
    %v732 = vmul.f32 %v696, %v725
    %v733 = vmul.f32 %v698, %v726
    %v734 = vpack.c.bf16 %v728, %v727
    %v735 = vpack.c.bf16 %v730, %v729
    %v736 = vpack.c.bf16 %v732, %v731
    %v737 = vpack.c.bf16 %v733, %v733
    %v739 = vsel %vm122, %v734, 0
    %v742 = vsel %vm122, %v735, 0
    %v745 = vsel %vm122, %v736, 0
    %v748 = vsel %vm122, %v737, 0
    %v751 = vsel %vm282, %v590, 0
    %753 = vmatpush.bf16.msra.mxu0 0
    %754 = vmatpush.bf16.msra.mxu0 0
    %755 = vmatpush.bf16.msra.mxu0 0
    %756 = vmatpush.bf16.msra.mxu0 0
    %757 = vmatpush.bf16.msra.mxu0 %v751
    %758 = vmatpush.bf16.msra.mxu0 %v589
    %759 = vmatpush.bf16.msra.mxu0 %v588
    %760 = vmatpush.bf16.msra.mxu0 %v587
    %761 = vmatmul.bf16.gmra.mxu0 %v739
    %v762 = vpop.f32.mrf.mxu0
    %v763 = vadd.f32 0.0, %v762
    %v764 = vpop.f32.mrf.mxu0
    %v765 = vadd.f32 0.0, %v764
    %766 = vmatmul.bf16.gmra.mxu0 %v742
    %v767 = vpop.f32.mrf.mxu0
    %v768 = vadd.f32 0.0, %v767
    %v769 = vpop.f32.mrf.mxu0
    %v770 = vadd.f32 0.0, %v769
    %771 = vmatmul.bf16.gmra.mxu0 %v745
    %v772 = vpop.f32.mrf.mxu0
    %v773 = vadd.f32 0.0, %v772
    %v774 = vpop.f32.mrf.mxu0
    %v775 = vadd.f32 0.0, %v774
    %776 = vmatmul.bf16.gmra.mxu0 %v748
    %v777 = vpop.f32.mrf.mxu0
    %v778 = vadd.f32 0.0, %v777
    %v779 = vpop.f32.mrf.mxu0
    %780 = vdwg.mxu0
    %s781 = scalar_lea.vmem [#allocation10], 112
    %782 = vst.msk [vmem:[%s781] sm:$0xff] %vm122, %v763
    %783 = vst.msk [vmem:[%s781 + $0x8] sm:$0xff] %vm122, %v765
    %784 = vst.msk [vmem:[%s781 + $0x10] sm:$0xff] %vm122, %v768
    %785 = vst.msk [vmem:[%s781 + $0x18] sm:$0xff] %vm122, %v770
    %786 = vst.msk [vmem:[%s781 + $0x20] sm:$0xff] %vm122, %v773
    %787 = vst.msk [vmem:[%s781 + $0x28] sm:$0xff] %vm122, %v775
    %788 = vst.msk [vmem:[%s781 + $0x30] sm:$0xff] %vm122, %v778
    %s789 = scalar_lea.vmem [#allocation2], 168
    %v790 = vld [vmem:[%s789] sm:$0xff]
    %v791 = vld [vmem:[%s789 + $0x8] sm:$0xff]
    %v792 = vld [vmem:[%s789 + $0x10] sm:$0xff]
    %v793 = vld [vmem:[%s789 + $0x18] sm:$0xff]
    %v794 = vld [vmem:[%s789 + $0x20] sm:$0xff]
    %v795 = vld [vmem:[%s789 + $0x28] sm:$0xff]
    %v796 = vld [vmem:[%s789 + $0x30] sm:$0xff]
    %v797 = vpack.c.bf16 %v791, %v790
    %v798 = vpack.c.bf16 %v793, %v792
    %v799 = vpack.c.bf16 %v795, %v794
    %v800 = vpack.c.bf16 %v796, %v796
    %s801 = scalar_lea.vmem [#allocation5], 168
    %v802 = vld [vmem:[%s801] sm:$0xff]
    %v803 = vld [vmem:[%s801 + $0x8] sm:$0xff]
    %v804 = vld [vmem:[%s801 + $0x10] sm:$0xff]
    %v805 = vld [vmem:[%s801 + $0x18] sm:$0xff]
    %v806 = vld [vmem:[%s801 + $0x20] sm:$0xff]
    %v807 = vld [vmem:[%s801 + $0x28] sm:$0xff]
    %v808 = vld [vmem:[%s801 + $0x30] sm:$0xff]
    %v809 = vpack.c.bf16 %v803, %v802
    %v810 = vpack.c.bf16 %v805, %v804
    %v811 = vpack.c.bf16 %v807, %v806
    %v812 = vpack.c.bf16 %v808, %v808
    %s813 = scalar_lea.vmem [#allocation7], 168
    %v814 = vld [vmem:[%s813] sm:$0xff]
    %v815 = vld [vmem:[%s813 + $0x8] sm:$0xff]
    %v816 = vld [vmem:[%s813 + $0x10] sm:$0xff]
    %v817 = vld [vmem:[%s813 + $0x18] sm:$0xff]
    %v818 = vld [vmem:[%s813 + $0x20] sm:$0xff]
    %v819 = vld [vmem:[%s813 + $0x28] sm:$0xff]
    %v820 = vld [vmem:[%s813 + $0x30] sm:$0xff]
    %v821 = vpack.c.bf16 %v815, %v814
    %v822 = vpack.c.bf16 %v817, %v816
    %v823 = vpack.c.bf16 %v819, %v818
    %v824 = vpack.c.bf16 %v820, %v820
    %v826 = vsel %vm122, %v797, 0
    %v829 = vsel %vm122, %v798, 0
    %v832 = vsel %vm122, %v799, 0
    %v835 = vsel %vm122, %v800, 0
    %v838 = vsel %vm122, %v809, 0
    %v841 = vsel %vm122, %v810, 0
    %v844 = vsel %vm122, %v811, 0
    %v847 = vsel %vm122, %v812, 0
    %849 = vmatpush.bf16.xpose.msra.mxu0 0
    %850 = vmatpush.bf16.xpose.msra.mxu0 0
    %851 = vmatpush.bf16.xpose.msra.mxu0 0
    %852 = vmatpush.bf16.xpose.msra.mxu0 0
    %853 = vmatpush.bf16.xpose.msra.mxu0 %v847
    %854 = vmatpush.bf16.xpose.msra.mxu0 %v844
    %855 = vmatpush.bf16.xpose.msra.mxu0 %v841
    %856 = vmatpush.bf16.xpose.msra.mxu0 %v838
    %857 = vmatmul.bf16.gmra.mxu0 %v826
    %v858 = vpop.f32.mrf.mxu0
    %v859 = vadd.f32 0.0, %v858
    %v860 = vpop.f32.mrf.mxu0
    %v861 = vadd.f32 0.0, %v860
    %862 = vmatmul.bf16.gmra.mxu0 %v829
    %v863 = vpop.f32.mrf.mxu0
    %v864 = vadd.f32 0.0, %v863
    %v865 = vpop.f32.mrf.mxu0
    %v866 = vadd.f32 0.0, %v865
    %867 = vmatmul.bf16.gmra.mxu0 %v832
    %v868 = vpop.f32.mrf.mxu0
    %v869 = vadd.f32 0.0, %v868
    %v870 = vpop.f32.mrf.mxu0
    %v871 = vadd.f32 0.0, %v870
    %872 = vmatmul.bf16.gmra.mxu0 %v835
    %v873 = vpop.f32.mrf.mxu0
    %v874 = vadd.f32 0.0, %v873
    %v875 = vpop.f32.mrf.mxu0
    %876 = vdwg.mxu0
    %v877 = vmul.f32 %v859, 0.13363062
    %v878 = vmul.f32 %v861, 0.13363062
    %v879 = vmul.f32 %v864, 0.13363062
    %v880 = vmul.f32 %v866, 0.13363062
    %v881 = vmul.f32 %v869, 0.13363062
    %v882 = vmul.f32 %v871, 0.13363062
    %v883 = vmul.f32 %v874, 0.13363062
    %v884 = vadd.f32 %v877, %v82
    %v885 = vadd.f32 %v878, %v83
    %v886 = vadd.f32 %v879, %v84
    %v887 = vadd.f32 %v880, %v85
    %v888 = vadd.f32 %v881, %v86
    %v889 = vadd.f32 %v882, %v87
    %v890 = vadd.f32 %v883, %v88
    %v891 = vsel %vm122, %v884, -inf
    %892 = vmax.xlane.f32.xlu0 %v891
    %v893 = vpop.xlane.xlu0 %892
    %v894 = vsel %vm122, %v885, -inf
    %895 = vmax.xlane.f32.xlu0 %v894
    %v896 = vpop.xlane.xlu0 %895
    %v897 = vsel %vm122, %v886, -inf
    %898 = vmax.xlane.f32.xlu0 %v897
    %v899 = vpop.xlane.xlu0 %898
    %v900 = vsel %vm122, %v887, -inf
    %901 = vmax.xlane.f32.xlu0 %v900
    %v902 = vpop.xlane.xlu0 %901
    %v903 = vsel %vm122, %v888, -inf
    %904 = vmax.xlane.f32.xlu0 %v903
    %v905 = vpop.xlane.xlu0 %904
    %v906 = vsel %vm122, %v889, -inf
    %907 = vmax.xlane.f32.xlu0 %v906
    %v908 = vpop.xlane.xlu0 %907
    %v909 = vsel %vm122, %v890, -inf
    %910 = vmax.xlane.f32.xlu0 %v909
    %v911 = vpop.xlane.xlu0 %910
    %v912 = vsub.f32 %v884, %v893
    %v913 = vsub.f32 %v885, %v896
    %v914 = vsub.f32 %v886, %v899
    %v915 = vsub.f32 %v887, %v902
    %v916 = vsub.f32 %v888, %v905
    %v917 = vsub.f32 %v889, %v908
    %v918 = vsub.f32 %v890, %v911
    %v919 = vmul.f32 %v912, 1.442695
    %v920 = vpow.pop %v919
    %v921 = vmul.f32 %v913, 1.442695
    %v922 = vpow.pop %v921
    %v923 = vmul.f32 %v914, 1.442695
    %v924 = vpow.pop %v923
    %v925 = vmul.f32 %v915, 1.442695
    %v926 = vpow.pop %v925
    %v927 = vmul.f32 %v916, 1.442695
    %v928 = vpow.pop %v927
    %v929 = vmul.f32 %v917, 1.442695
    %v930 = vpow.pop %v929
    %v931 = vmul.f32 %v918, 1.442695
    %v932 = vpow.pop %v931
    %v933 = vsel %vm122, %v920, 0.0
    %934 = vadd.xlane.f32.xlu0 %v933
    %v935 = vpop.xlane.xlu0 %934
    %v936 = vsel %vm122, %v922, 0.0
    %937 = vadd.xlane.f32.xlu0 %v936
    %v938 = vpop.xlane.xlu0 %937
    %v939 = vsel %vm122, %v924, 0.0
    %940 = vadd.xlane.f32.xlu0 %v939
    %v941 = vpop.xlane.xlu0 %940
    %v942 = vsel %vm122, %v926, 0.0
    %943 = vadd.xlane.f32.xlu0 %v942
    %v944 = vpop.xlane.xlu0 %943
    %v945 = vsel %vm122, %v928, 0.0
    %946 = vadd.xlane.f32.xlu0 %v945
    %v947 = vpop.xlane.xlu0 %946
    %v948 = vsel %vm122, %v930, 0.0
    %949 = vadd.xlane.f32.xlu0 %v948
    %v950 = vpop.xlane.xlu0 %949
    %v951 = vsel %vm122, %v932, 0.0
    %952 = vadd.xlane.f32.xlu0 %v951
    %v953 = vpop.xlane.xlu0 %952
    %v954 = vrcp.pop %v935
    %v955 = vrcp.pop %v938
    %v956 = vrcp.pop %v941
    %v957 = vrcp.pop %v944
    %v958 = vrcp.pop %v947
    %v959 = vrcp.pop %v950
    %v960 = vrcp.pop %v953
    %v961 = vmul.f32 %v920, %v954
    %v962 = vmul.f32 %v922, %v955
    %v963 = vmul.f32 %v924, %v956
    %v964 = vmul.f32 %v926, %v957
    %v965 = vmul.f32 %v928, %v958
    %v966 = vmul.f32 %v930, %v959
    %v967 = vmul.f32 %v932, %v960
    %v968 = vpack.c.bf16 %v962, %v961
    %v969 = vpack.c.bf16 %v964, %v963
    %v970 = vpack.c.bf16 %v966, %v965
    %v971 = vpack.c.bf16 %v967, %v967
    %v973 = vsel %vm122, %v968, 0
    %v976 = vsel %vm122, %v969, 0
    %v979 = vsel %vm122, %v970, 0
    %v982 = vsel %vm122, %v971, 0
    %v985 = vsel %vm282, %v824, 0
    %987 = vmatpush.bf16.msra.mxu0 0
    %988 = vmatpush.bf16.msra.mxu0 0
    %989 = vmatpush.bf16.msra.mxu0 0
    %990 = vmatpush.bf16.msra.mxu0 0
    %991 = vmatpush.bf16.msra.mxu0 %v985
    %992 = vmatpush.bf16.msra.mxu0 %v823
    %993 = vmatpush.bf16.msra.mxu0 %v822
    %994 = vmatpush.bf16.msra.mxu0 %v821
    %995 = vmatmul.bf16.gmra.mxu0 %v973
    %v996 = vpop.f32.mrf.mxu0
    %v997 = vadd.f32 0.0, %v996
    %v998 = vpop.f32.mrf.mxu0
    %v999 = vadd.f32 0.0, %v998
    %1000 = vmatmul.bf16.gmra.mxu0 %v976
    %v1001 = vpop.f32.mrf.mxu0
    %v1002 = vadd.f32 0.0, %v1001
    %v1003 = vpop.f32.mrf.mxu0
    %v1004 = vadd.f32 0.0, %v1003
    %1005 = vmatmul.bf16.gmra.mxu0 %v979
    %v1006 = vpop.f32.mrf.mxu0
    %v1007 = vadd.f32 0.0, %v1006
    %v1008 = vpop.f32.mrf.mxu0
    %v1009 = vadd.f32 0.0, %v1008
    %1010 = vmatmul.bf16.gmra.mxu0 %v982
    %v1011 = vpop.f32.mrf.mxu0
    %v1012 = vadd.f32 0.0, %v1011
    %v1013 = vpop.f32.mrf.mxu0
    %1014 = vdwg.mxu0
    %s1015 = scalar_lea.vmem [#allocation10], 168
    %1016 = vst.msk [vmem:[%s1015] sm:$0xff] %vm122, %v997
    %1017 = vst.msk [vmem:[%s1015 + $0x8] sm:$0xff] %vm122, %v999
    %1018 = vst.msk [vmem:[%s1015 + $0x10] sm:$0xff] %vm122, %v1002
    %1019 = vst.msk [vmem:[%s1015 + $0x18] sm:$0xff] %vm122, %v1004
    %1020 = vst.msk [vmem:[%s1015 + $0x20] sm:$0xff] %vm122, %v1007
    %1021 = vst.msk [vmem:[%s1015 + $0x28] sm:$0xff] %vm122, %v1009
    %1022 = vst.msk [vmem:[%s1015 + $0x30] sm:$0xff] %vm122, %v1012
    %s1023 = scalar_lea.vmem [#allocation2], 224
    %v1024 = vld [vmem:[%s1023] sm:$0xff]
    %v1025 = vld [vmem:[%s1023 + $0x8] sm:$0xff]
    %v1026 = vld [vmem:[%s1023 + $0x10] sm:$0xff]
    %v1027 = vld [vmem:[%s1023 + $0x18] sm:$0xff]
    %v1028 = vld [vmem:[%s1023 + $0x20] sm:$0xff]
    %v1029 = vld [vmem:[%s1023 + $0x28] sm:$0xff]
    %v1030 = vld [vmem:[%s1023 + $0x30] sm:$0xff]
    %v1031 = vpack.c.bf16 %v1025, %v1024
    %v1032 = vpack.c.bf16 %v1027, %v1026
    %v1033 = vpack.c.bf16 %v1029, %v1028
    %v1034 = vpack.c.bf16 %v1030, %v1030
    %s1035 = scalar_lea.vmem [#allocation5], 224
    %v1036 = vld [vmem:[%s1035] sm:$0xff]
    %v1037 = vld [vmem:[%s1035 + $0x8] sm:$0xff]
    %v1038 = vld [vmem:[%s1035 + $0x10] sm:$0xff]
    %v1039 = vld [vmem:[%s1035 + $0x18] sm:$0xff]
    %v1040 = vld [vmem:[%s1035 + $0x20] sm:$0xff]
    %v1041 = vld [vmem:[%s1035 + $0x28] sm:$0xff]
    %v1042 = vld [vmem:[%s1035 + $0x30] sm:$0xff]
    %v1043 = vpack.c.bf16 %v1037, %v1036
    %v1044 = vpack.c.bf16 %v1039, %v1038
    %v1045 = vpack.c.bf16 %v1041, %v1040
    %v1046 = vpack.c.bf16 %v1042, %v1042
    %s1047 = scalar_lea.vmem [#allocation7], 224
    %v1048 = vld [vmem:[%s1047] sm:$0xff]
    %v1049 = vld [vmem:[%s1047 + $0x8] sm:$0xff]
    %v1050 = vld [vmem:[%s1047 + $0x10] sm:$0xff]
    %v1051 = vld [vmem:[%s1047 + $0x18] sm:$0xff]
    %v1052 = vld [vmem:[%s1047 + $0x20] sm:$0xff]
    %v1053 = vld [vmem:[%s1047 + $0x28] sm:$0xff]
    %v1054 = vld [vmem:[%s1047 + $0x30] sm:$0xff]
    %v1055 = vpack.c.bf16 %v1049, %v1048
    %v1056 = vpack.c.bf16 %v1051, %v1050
    %v1057 = vpack.c.bf16 %v1053, %v1052
    %v1058 = vpack.c.bf16 %v1054, %v1054
    %v1060 = vsel %vm122, %v1031, 0
    %v1063 = vsel %vm122, %v1032, 0
    %v1066 = vsel %vm122, %v1033, 0
    %v1069 = vsel %vm122, %v1034, 0
    %v1072 = vsel %vm122, %v1043, 0
    %v1075 = vsel %vm122, %v1044, 0
    %v1078 = vsel %vm122, %v1045, 0
    %v1081 = vsel %vm122, %v1046, 0
    %1083 = vmatpush.bf16.xpose.msra.mxu0 0
    %1084 = vmatpush.bf16.xpose.msra.mxu0 0
    %1085 = vmatpush.bf16.xpose.msra.mxu0 0
    %1086 = vmatpush.bf16.xpose.msra.mxu0 0
    %1087 = vmatpush.bf16.xpose.msra.mxu0 %v1081
    %1088 = vmatpush.bf16.xpose.msra.mxu0 %v1078
    %1089 = vmatpush.bf16.xpose.msra.mxu0 %v1075
    %1090 = vmatpush.bf16.xpose.msra.mxu0 %v1072
    %1091 = vmatmul.bf16.gmra.mxu0 %v1060
    %v1092 = vpop.f32.mrf.mxu0
    %v1093 = vadd.f32 0.0, %v1092
    %v1094 = vpop.f32.mrf.mxu0
    %v1095 = vadd.f32 0.0, %v1094
    %1096 = vmatmul.bf16.gmra.mxu0 %v1063
    %v1097 = vpop.f32.mrf.mxu0
    %v1098 = vadd.f32 0.0, %v1097
    %v1099 = vpop.f32.mrf.mxu0
    %v1100 = vadd.f32 0.0, %v1099
    %1101 = vmatmul.bf16.gmra.mxu0 %v1066
    %v1102 = vpop.f32.mrf.mxu0
    %v1103 = vadd.f32 0.0, %v1102
    %v1104 = vpop.f32.mrf.mxu0
    %v1105 = vadd.f32 0.0, %v1104
    %1106 = vmatmul.bf16.gmra.mxu0 %v1069
    %v1107 = vpop.f32.mrf.mxu0
    %v1108 = vadd.f32 0.0, %v1107
    %v1109 = vpop.f32.mrf.mxu0
    %1110 = vdwg.mxu0
    %v1111 = vmul.f32 %v1093, 0.13363062
    %v1112 = vmul.f32 %v1095, 0.13363062
    %v1113 = vmul.f32 %v1098, 0.13363062
    %v1114 = vmul.f32 %v1100, 0.13363062
    %v1115 = vmul.f32 %v1103, 0.13363062
    %v1116 = vmul.f32 %v1105, 0.13363062
    %v1117 = vmul.f32 %v1108, 0.13363062
    %v1118 = vadd.f32 %v1111, %v82
    %v1119 = vadd.f32 %v1112, %v83
    %v1120 = vadd.f32 %v1113, %v84
    %v1121 = vadd.f32 %v1114, %v85
    %v1122 = vadd.f32 %v1115, %v86
    %v1123 = vadd.f32 %v1116, %v87
    %v1124 = vadd.f32 %v1117, %v88
    %v1125 = vsel %vm122, %v1118, -inf
    %1126 = vmax.xlane.f32.xlu0 %v1125
    %v1127 = vpop.xlane.xlu0 %1126
    %v1128 = vsel %vm122, %v1119, -inf
    %1129 = vmax.xlane.f32.xlu0 %v1128
    %v1130 = vpop.xlane.xlu0 %1129
    %v1131 = vsel %vm122, %v1120, -inf
    %1132 = vmax.xlane.f32.xlu0 %v1131
    %v1133 = vpop.xlane.xlu0 %1132
    %v1134 = vsel %vm122, %v1121, -inf
    %1135 = vmax.xlane.f32.xlu0 %v1134
    %v1136 = vpop.xlane.xlu0 %1135
    %v1137 = vsel %vm122, %v1122, -inf
    %1138 = vmax.xlane.f32.xlu0 %v1137
    %v1139 = vpop.xlane.xlu0 %1138
    %v1140 = vsel %vm122, %v1123, -inf
    %1141 = vmax.xlane.f32.xlu0 %v1140
    %v1142 = vpop.xlane.xlu0 %1141
    %v1143 = vsel %vm122, %v1124, -inf
    %1144 = vmax.xlane.f32.xlu0 %v1143
    %v1145 = vpop.xlane.xlu0 %1144
    %v1146 = vsub.f32 %v1118, %v1127
    %v1147 = vsub.f32 %v1119, %v1130
    %v1148 = vsub.f32 %v1120, %v1133
    %v1149 = vsub.f32 %v1121, %v1136
    %v1150 = vsub.f32 %v1122, %v1139
    %v1151 = vsub.f32 %v1123, %v1142
    %v1152 = vsub.f32 %v1124, %v1145
    %v1153 = vmul.f32 %v1146, 1.442695
    %v1154 = vpow.pop %v1153
    %v1155 = vmul.f32 %v1147, 1.442695
    %v1156 = vpow.pop %v1155
    %v1157 = vmul.f32 %v1148, 1.442695
    %v1158 = vpow.pop %v1157
    %v1159 = vmul.f32 %v1149, 1.442695
    %v1160 = vpow.pop %v1159
    %v1161 = vmul.f32 %v1150, 1.442695
    %v1162 = vpow.pop %v1161
    %v1163 = vmul.f32 %v1151, 1.442695
    %v1164 = vpow.pop %v1163
    %v1165 = vmul.f32 %v1152, 1.442695
    %v1166 = vpow.pop %v1165
    %v1167 = vsel %vm122, %v1154, 0.0
    %1168 = vadd.xlane.f32.xlu0 %v1167
    %v1169 = vpop.xlane.xlu0 %1168
    %v1170 = vsel %vm122, %v1156, 0.0
    %1171 = vadd.xlane.f32.xlu0 %v1170
    %v1172 = vpop.xlane.xlu0 %1171
    %v1173 = vsel %vm122, %v1158, 0.0
    %1174 = vadd.xlane.f32.xlu0 %v1173
    %v1175 = vpop.xlane.xlu0 %1174
    %v1176 = vsel %vm122, %v1160, 0.0
    %1177 = vadd.xlane.f32.xlu0 %v1176
    %v1178 = vpop.xlane.xlu0 %1177
    %v1179 = vsel %vm122, %v1162, 0.0
    %1180 = vadd.xlane.f32.xlu0 %v1179
    %v1181 = vpop.xlane.xlu0 %1180
    %v1182 = vsel %vm122, %v1164, 0.0
    %1183 = vadd.xlane.f32.xlu0 %v1182
    %v1184 = vpop.xlane.xlu0 %1183
    %v1185 = vsel %vm122, %v1166, 0.0
    %1186 = vadd.xlane.f32.xlu0 %v1185
    %v1187 = vpop.xlane.xlu0 %1186
    %v1188 = vrcp.pop %v1169
    %v1189 = vrcp.pop %v1172
    %v1190 = vrcp.pop %v1175
    %v1191 = vrcp.pop %v1178
    %v1192 = vrcp.pop %v1181
    %v1193 = vrcp.pop %v1184
    %v1194 = vrcp.pop %v1187
    %v1195 = vmul.f32 %v1154, %v1188
    %v1196 = vmul.f32 %v1156, %v1189
    %v1197 = vmul.f32 %v1158, %v1190
    %v1198 = vmul.f32 %v1160, %v1191
    %v1199 = vmul.f32 %v1162, %v1192
    %v1200 = vmul.f32 %v1164, %v1193
    %v1201 = vmul.f32 %v1166, %v1194
    %v1202 = vpack.c.bf16 %v1196, %v1195
    %v1203 = vpack.c.bf16 %v1198, %v1197
    %v1204 = vpack.c.bf16 %v1200, %v1199
    %v1205 = vpack.c.bf16 %v1201, %v1201
    %v1207 = vsel %vm122, %v1202, 0
    %v1210 = vsel %vm122, %v1203, 0
    %v1213 = vsel %vm122, %v1204, 0
    %v1216 = vsel %vm122, %v1205, 0
    %v1219 = vsel %vm282, %v1058, 0
    %1221 = vmatpush.bf16.msra.mxu0 0
    %1222 = vmatpush.bf16.msra.mxu0 0
    %1223 = vmatpush.bf16.msra.mxu0 0
    %1224 = vmatpush.bf16.msra.mxu0 0
    %1225 = vmatpush.bf16.msra.mxu0 %v1219
    %1226 = vmatpush.bf16.msra.mxu0 %v1057
    %1227 = vmatpush.bf16.msra.mxu0 %v1056
    %1228 = vmatpush.bf16.msra.mxu0 %v1055
    %1229 = vmatmul.bf16.gmra.mxu0 %v1207
    %v1230 = vpop.f32.mrf.mxu0
    %v1231 = vadd.f32 0.0, %v1230
    %v1232 = vpop.f32.mrf.mxu0
    %v1233 = vadd.f32 0.0, %v1232
    %1234 = vmatmul.bf16.gmra.mxu0 %v1210
    %v1235 = vpop.f32.mrf.mxu0
    %v1236 = vadd.f32 0.0, %v1235
    %v1237 = vpop.f32.mrf.mxu0
    %v1238 = vadd.f32 0.0, %v1237
    %1239 = vmatmul.bf16.gmra.mxu0 %v1213
    %v1240 = vpop.f32.mrf.mxu0
    %v1241 = vadd.f32 0.0, %v1240
    %v1242 = vpop.f32.mrf.mxu0
    %v1243 = vadd.f32 0.0, %v1242
    %1244 = vmatmul.bf16.gmra.mxu0 %v1216
    %v1245 = vpop.f32.mrf.mxu0
    %v1246 = vadd.f32 0.0, %v1245
    %v1247 = vpop.f32.mrf.mxu0
    %1248 = vdwg.mxu0
    %s1249 = scalar_lea.vmem [#allocation10], 224
    %1250 = vst.msk [vmem:[%s1249] sm:$0xff] %vm122, %v1231
    %1251 = vst.msk [vmem:[%s1249 + $0x8] sm:$0xff] %vm122, %v1233
    %1252 = vst.msk [vmem:[%s1249 + $0x10] sm:$0xff] %vm122, %v1236
    %1253 = vst.msk [vmem:[%s1249 + $0x18] sm:$0xff] %vm122, %v1238
    %1254 = vst.msk [vmem:[%s1249 + $0x20] sm:$0xff] %vm122, %v1241
    %1255 = vst.msk [vmem:[%s1249 + $0x28] sm:$0xff] %vm122, %v1243
    %1256 = vst.msk [vmem:[%s1249 + $0x30] sm:$0xff] %vm122, %v1246
    %s1257 = scalar_lea.vmem [#allocation2], 280
    %v1258 = vld [vmem:[%s1257] sm:$0xff]
    %v1259 = vld [vmem:[%s1257 + $0x8] sm:$0xff]
    %v1260 = vld [vmem:[%s1257 + $0x10] sm:$0xff]
    %v1261 = vld [vmem:[%s1257 + $0x18] sm:$0xff]
    %v1262 = vld [vmem:[%s1257 + $0x20] sm:$0xff]
    %v1263 = vld [vmem:[%s1257 + $0x28] sm:$0xff]
    %v1264 = vld [vmem:[%s1257 + $0x30] sm:$0xff]
    %v1265 = vpack.c.bf16 %v1259, %v1258
    %v1266 = vpack.c.bf16 %v1261, %v1260
    %v1267 = vpack.c.bf16 %v1263, %v1262
    %v1268 = vpack.c.bf16 %v1264, %v1264
    %s1269 = scalar_lea.vmem [#allocation5], 280
    %v1270 = vld [vmem:[%s1269] sm:$0xff]
    %v1271 = vld [vmem:[%s1269 + $0x8] sm:$0xff]
    %v1272 = vld [vmem:[%s1269 + $0x10] sm:$0xff]
    %v1273 = vld [vmem:[%s1269 + $0x18] sm:$0xff]
    %v1274 = vld [vmem:[%s1269 + $0x20] sm:$0xff]
    %v1275 = vld [vmem:[%s1269 + $0x28] sm:$0xff]
    %v1276 = vld [vmem:[%s1269 + $0x30] sm:$0xff]
    %v1277 = vpack.c.bf16 %v1271, %v1270
    %v1278 = vpack.c.bf16 %v1273, %v1272
    %v1279 = vpack.c.bf16 %v1275, %v1274
    %v1280 = vpack.c.bf16 %v1276, %v1276
    %s1281 = scalar_lea.vmem [#allocation7], 280
    %v1282 = vld [vmem:[%s1281] sm:$0xff]
    %v1283 = vld [vmem:[%s1281 + $0x8] sm:$0xff]
    %v1284 = vld [vmem:[%s1281 + $0x10] sm:$0xff]
    %v1285 = vld [vmem:[%s1281 + $0x18] sm:$0xff]
    %v1286 = vld [vmem:[%s1281 + $0x20] sm:$0xff]
    %v1287 = vld [vmem:[%s1281 + $0x28] sm:$0xff]
    %v1288 = vld [vmem:[%s1281 + $0x30] sm:$0xff]
    %v1289 = vpack.c.bf16 %v1283, %v1282
    %v1290 = vpack.c.bf16 %v1285, %v1284
    %v1291 = vpack.c.bf16 %v1287, %v1286
    %v1292 = vpack.c.bf16 %v1288, %v1288
    %v1294 = vsel %vm122, %v1265, 0
    %v1297 = vsel %vm122, %v1266, 0
    %v1300 = vsel %vm122, %v1267, 0
    %v1303 = vsel %vm122, %v1268, 0
    %v1306 = vsel %vm122, %v1277, 0
    %v1309 = vsel %vm122, %v1278, 0
    %v1312 = vsel %vm122, %v1279, 0
    %v1315 = vsel %vm122, %v1280, 0
    %1317 = vmatpush.bf16.xpose.msra.mxu0 0
    %1318 = vmatpush.bf16.xpose.msra.mxu0 0
    %1319 = vmatpush.bf16.xpose.msra.mxu0 0
    %1320 = vmatpush.bf16.xpose.msra.mxu0 0
    %1321 = vmatpush.bf16.xpose.msra.mxu0 %v1315
    %1322 = vmatpush.bf16.xpose.msra.mxu0 %v1312
    %1323 = vmatpush.bf16.xpose.msra.mxu0 %v1309
    %1324 = vmatpush.bf16.xpose.msra.mxu0 %v1306
    %1325 = vmatmul.bf16.gmra.mxu0 %v1294
    %v1326 = vpop.f32.mrf.mxu0
    %v1327 = vadd.f32 0.0, %v1326
    %v1328 = vpop.f32.mrf.mxu0
    %v1329 = vadd.f32 0.0, %v1328
    %1330 = vmatmul.bf16.gmra.mxu0 %v1297
    %v1331 = vpop.f32.mrf.mxu0
    %v1332 = vadd.f32 0.0, %v1331
    %v1333 = vpop.f32.mrf.mxu0
    %v1334 = vadd.f32 0.0, %v1333
    %1335 = vmatmul.bf16.gmra.mxu0 %v1300
    %v1336 = vpop.f32.mrf.mxu0
    %v1337 = vadd.f32 0.0, %v1336
    %v1338 = vpop.f32.mrf.mxu0
    %v1339 = vadd.f32 0.0, %v1338
    %1340 = vmatmul.bf16.gmra.mxu0 %v1303
    %v1341 = vpop.f32.mrf.mxu0
    %v1342 = vadd.f32 0.0, %v1341
    %v1343 = vpop.f32.mrf.mxu0
    %1344 = vdwg.mxu0
    %v1345 = vmul.f32 %v1327, 0.13363062
    %v1346 = vmul.f32 %v1329, 0.13363062
    %v1347 = vmul.f32 %v1332, 0.13363062
    %v1348 = vmul.f32 %v1334, 0.13363062
    %v1349 = vmul.f32 %v1337, 0.13363062
    %v1350 = vmul.f32 %v1339, 0.13363062
    %v1351 = vmul.f32 %v1342, 0.13363062
    %v1352 = vadd.f32 %v1345, %v82
    %v1353 = vadd.f32 %v1346, %v83
    %v1354 = vadd.f32 %v1347, %v84
    %v1355 = vadd.f32 %v1348, %v85
    %v1356 = vadd.f32 %v1349, %v86
    %v1357 = vadd.f32 %v1350, %v87
    %v1358 = vadd.f32 %v1351, %v88
    %v1359 = vsel %vm122, %v1352, -inf
    %1360 = vmax.xlane.f32.xlu0 %v1359
    %v1361 = vpop.xlane.xlu0 %1360
    %v1362 = vsel %vm122, %v1353, -inf
    %1363 = vmax.xlane.f32.xlu0 %v1362
    %v1364 = vpop.xlane.xlu0 %1363
    %v1365 = vsel %vm122, %v1354, -inf
    %1366 = vmax.xlane.f32.xlu0 %v1365
    %v1367 = vpop.xlane.xlu0 %1366
    %v1368 = vsel %vm122, %v1355, -inf
    %1369 = vmax.xlane.f32.xlu0 %v1368
    %v1370 = vpop.xlane.xlu0 %1369
    %v1371 = vsel %vm122, %v1356, -inf
    %1372 = vmax.xlane.f32.xlu0 %v1371
    %v1373 = vpop.xlane.xlu0 %1372
    %v1374 = vsel %vm122, %v1357, -inf
    %1375 = vmax.xlane.f32.xlu0 %v1374
    %v1376 = vpop.xlane.xlu0 %1375
    %v1377 = vsel %vm122, %v1358, -inf
    %1378 = vmax.xlane.f32.xlu0 %v1377
    %v1379 = vpop.xlane.xlu0 %1378
    %v1380 = vsub.f32 %v1352, %v1361
    %v1381 = vsub.f32 %v1353, %v1364
    %v1382 = vsub.f32 %v1354, %v1367
    %v1383 = vsub.f32 %v1355, %v1370
    %v1384 = vsub.f32 %v1356, %v1373
    %v1385 = vsub.f32 %v1357, %v1376
    %v1386 = vsub.f32 %v1358, %v1379
    %v1387 = vmul.f32 %v1380, 1.442695
    %v1388 = vpow.pop %v1387
    %v1389 = vmul.f32 %v1381, 1.442695
    %v1390 = vpow.pop %v1389
    %v1391 = vmul.f32 %v1382, 1.442695
    %v1392 = vpow.pop %v1391
    %v1393 = vmul.f32 %v1383, 1.442695
    %v1394 = vpow.pop %v1393
    %v1395 = vmul.f32 %v1384, 1.442695
    %v1396 = vpow.pop %v1395
    %v1397 = vmul.f32 %v1385, 1.442695
    %v1398 = vpow.pop %v1397
    %v1399 = vmul.f32 %v1386, 1.442695
    %v1400 = vpow.pop %v1399
    %v1401 = vsel %vm122, %v1388, 0.0
    %1402 = vadd.xlane.f32.xlu0 %v1401
    %v1403 = vpop.xlane.xlu0 %1402
    %v1404 = vsel %vm122, %v1390, 0.0
    %1405 = vadd.xlane.f32.xlu0 %v1404
    %v1406 = vpop.xlane.xlu0 %1405
    %v1407 = vsel %vm122, %v1392, 0.0
    %1408 = vadd.xlane.f32.xlu0 %v1407
    %v1409 = vpop.xlane.xlu0 %1408
    %v1410 = vsel %vm122, %v1394, 0.0
    %1411 = vadd.xlane.f32.xlu0 %v1410
    %v1412 = vpop.xlane.xlu0 %1411
    %v1413 = vsel %vm122, %v1396, 0.0
    %1414 = vadd.xlane.f32.xlu0 %v1413
    %v1415 = vpop.xlane.xlu0 %1414
    %v1416 = vsel %vm122, %v1398, 0.0
    %1417 = vadd.xlane.f32.xlu0 %v1416
    %v1418 = vpop.xlane.xlu0 %1417
    %v1419 = vsel %vm122, %v1400, 0.0
    %1420 = vadd.xlane.f32.xlu0 %v1419
    %v1421 = vpop.xlane.xlu0 %1420
    %v1422 = vrcp.pop %v1403
    %v1423 = vrcp.pop %v1406
    %v1424 = vrcp.pop %v1409
    %v1425 = vrcp.pop %v1412
    %v1426 = vrcp.pop %v1415
    %v1427 = vrcp.pop %v1418
    %v1428 = vrcp.pop %v1421
    %v1429 = vmul.f32 %v1388, %v1422
    %v1430 = vmul.f32 %v1390, %v1423
    %v1431 = vmul.f32 %v1392, %v1424
    %v1432 = vmul.f32 %v1394, %v1425
    %v1433 = vmul.f32 %v1396, %v1426
    %v1434 = vmul.f32 %v1398, %v1427
    %v1435 = vmul.f32 %v1400, %v1428
    %v1436 = vpack.c.bf16 %v1430, %v1429
    %v1437 = vpack.c.bf16 %v1432, %v1431
    %v1438 = vpack.c.bf16 %v1434, %v1433
    %v1439 = vpack.c.bf16 %v1435, %v1435
    %v1441 = vsel %vm122, %v1436, 0
    %v1444 = vsel %vm122, %v1437, 0
    %v1447 = vsel %vm122, %v1438, 0
    %v1450 = vsel %vm122, %v1439, 0
    %v1453 = vsel %vm282, %v1292, 0
    %1455 = vmatpush.bf16.msra.mxu0 0
    %1456 = vmatpush.bf16.msra.mxu0 0
    %1457 = vmatpush.bf16.msra.mxu0 0
    %1458 = vmatpush.bf16.msra.mxu0 0
    %1459 = vmatpush.bf16.msra.mxu0 %v1453
    %1460 = vmatpush.bf16.msra.mxu0 %v1291
    %1461 = vmatpush.bf16.msra.mxu0 %v1290
    %1462 = vmatpush.bf16.msra.mxu0 %v1289
    %1463 = vmatmul.bf16.gmra.mxu0 %v1441
    %v1464 = vpop.f32.mrf.mxu0
    %v1465 = vadd.f32 0.0, %v1464
    %v1466 = vpop.f32.mrf.mxu0
    %v1467 = vadd.f32 0.0, %v1466
    %1468 = vmatmul.bf16.gmra.mxu0 %v1444
    %v1469 = vpop.f32.mrf.mxu0
    %v1470 = vadd.f32 0.0, %v1469
    %v1471 = vpop.f32.mrf.mxu0
    %v1472 = vadd.f32 0.0, %v1471
    %1473 = vmatmul.bf16.gmra.mxu0 %v1447
    %v1474 = vpop.f32.mrf.mxu0
    %v1475 = vadd.f32 0.0, %v1474
    %v1476 = vpop.f32.mrf.mxu0
    %v1477 = vadd.f32 0.0, %v1476
    %1478 = vmatmul.bf16.gmra.mxu0 %v1450
    %v1479 = vpop.f32.mrf.mxu0
    %v1480 = vadd.f32 0.0, %v1479
    %v1481 = vpop.f32.mrf.mxu0
    %1482 = vdwg.mxu0
    %s1483 = scalar_lea.vmem [#allocation10], 280
    %1484 = vst.msk [vmem:[%s1483] sm:$0xff] %vm122, %v1465
    %1485 = vst.msk [vmem:[%s1483 + $0x8] sm:$0xff] %vm122, %v1467
    %1486 = vst.msk [vmem:[%s1483 + $0x10] sm:$0xff] %vm122, %v1470
    %1487 = vst.msk [vmem:[%s1483 + $0x18] sm:$0xff] %vm122, %v1472
    %1488 = vst.msk [vmem:[%s1483 + $0x20] sm:$0xff] %vm122, %v1475
    %1489 = vst.msk [vmem:[%s1483 + $0x28] sm:$0xff] %vm122, %v1477
    %1490 = vst.msk [vmem:[%s1483 + $0x30] sm:$0xff] %vm122, %v1480
    %s1491 = scalar_lea.vmem [#allocation2], 336
    %v1492 = vld [vmem:[%s1491] sm:$0xff]
    %v1493 = vld [vmem:[%s1491 + $0x8] sm:$0xff]
    %v1494 = vld [vmem:[%s1491 + $0x10] sm:$0xff]
    %v1495 = vld [vmem:[%s1491 + $0x18] sm:$0xff]
    %v1496 = vld [vmem:[%s1491 + $0x20] sm:$0xff]
    %v1497 = vld [vmem:[%s1491 + $0x28] sm:$0xff]
    %v1498 = vld [vmem:[%s1491 + $0x30] sm:$0xff]
    %v1499 = vpack.c.bf16 %v1493, %v1492
    %v1500 = vpack.c.bf16 %v1495, %v1494
    %v1501 = vpack.c.bf16 %v1497, %v1496
    %v1502 = vpack.c.bf16 %v1498, %v1498
    %s1503 = scalar_lea.vmem [#allocation5], 336
    %v1504 = vld [vmem:[%s1503] sm:$0xff]
    %v1505 = vld [vmem:[%s1503 + $0x8] sm:$0xff]
    %v1506 = vld [vmem:[%s1503 + $0x10] sm:$0xff]
    %v1507 = vld [vmem:[%s1503 + $0x18] sm:$0xff]
    %v1508 = vld [vmem:[%s1503 + $0x20] sm:$0xff]
    %v1509 = vld [vmem:[%s1503 + $0x28] sm:$0xff]
    %v1510 = vld [vmem:[%s1503 + $0x30] sm:$0xff]
    %v1511 = vpack.c.bf16 %v1505, %v1504
    %v1512 = vpack.c.bf16 %v1507, %v1506
    %v1513 = vpack.c.bf16 %v1509, %v1508
    %v1514 = vpack.c.bf16 %v1510, %v1510
    %s1515 = scalar_lea.vmem [#allocation7], 336
    %v1516 = vld [vmem:[%s1515] sm:$0xff]
    %v1517 = vld [vmem:[%s1515 + $0x8] sm:$0xff]
    %v1518 = vld [vmem:[%s1515 + $0x10] sm:$0xff]
    %v1519 = vld [vmem:[%s1515 + $0x18] sm:$0xff]
    %v1520 = vld [vmem:[%s1515 + $0x20] sm:$0xff]
    %v1521 = vld [vmem:[%s1515 + $0x28] sm:$0xff]
    %v1522 = vld [vmem:[%s1515 + $0x30] sm:$0xff]
    %v1523 = vpack.c.bf16 %v1517, %v1516
    %v1524 = vpack.c.bf16 %v1519, %v1518
    %v1525 = vpack.c.bf16 %v1521, %v1520
    %v1526 = vpack.c.bf16 %v1522, %v1522
    %v1528 = vsel %vm122, %v1499, 0
    %v1531 = vsel %vm122, %v1500, 0
    %v1534 = vsel %vm122, %v1501, 0
    %v1537 = vsel %vm122, %v1502, 0
    %v1540 = vsel %vm122, %v1511, 0
    %v1543 = vsel %vm122, %v1512, 0
    %v1546 = vsel %vm122, %v1513, 0
    %v1549 = vsel %vm122, %v1514, 0
    %1551 = vmatpush.bf16.xpose.msra.mxu0 0
    %1552 = vmatpush.bf16.xpose.msra.mxu0 0
    %1553 = vmatpush.bf16.xpose.msra.mxu0 0
    %1554 = vmatpush.bf16.xpose.msra.mxu0 0
    %1555 = vmatpush.bf16.xpose.msra.mxu0 %v1549
    %1556 = vmatpush.bf16.xpose.msra.mxu0 %v1546
    %1557 = vmatpush.bf16.xpose.msra.mxu0 %v1543
    %1558 = vmatpush.bf16.xpose.msra.mxu0 %v1540
    %1559 = vmatmul.bf16.gmra.mxu0 %v1528
    %v1560 = vpop.f32.mrf.mxu0
    %v1561 = vadd.f32 0.0, %v1560
    %v1562 = vpop.f32.mrf.mxu0
    %v1563 = vadd.f32 0.0, %v1562
    %1564 = vmatmul.bf16.gmra.mxu0 %v1531
    %v1565 = vpop.f32.mrf.mxu0
    %v1566 = vadd.f32 0.0, %v1565
    %v1567 = vpop.f32.mrf.mxu0
    %v1568 = vadd.f32 0.0, %v1567
    %1569 = vmatmul.bf16.gmra.mxu0 %v1534
    %v1570 = vpop.f32.mrf.mxu0
    %v1571 = vadd.f32 0.0, %v1570
    %v1572 = vpop.f32.mrf.mxu0
    %v1573 = vadd.f32 0.0, %v1572
    %1574 = vmatmul.bf16.gmra.mxu0 %v1537
    %v1575 = vpop.f32.mrf.mxu0
    %v1576 = vadd.f32 0.0, %v1575
    %v1577 = vpop.f32.mrf.mxu0
    %1578 = vdwg.mxu0
    %v1579 = vmul.f32 %v1561, 0.13363062
    %v1580 = vmul.f32 %v1563, 0.13363062
    %v1581 = vmul.f32 %v1566, 0.13363062
    %v1582 = vmul.f32 %v1568, 0.13363062
    %v1583 = vmul.f32 %v1571, 0.13363062
    %v1584 = vmul.f32 %v1573, 0.13363062
    %v1585 = vmul.f32 %v1576, 0.13363062
    %v1586 = vadd.f32 %v1579, %v82
    %v1587 = vadd.f32 %v1580, %v83
    %v1588 = vadd.f32 %v1581, %v84
    %v1589 = vadd.f32 %v1582, %v85
    %v1590 = vadd.f32 %v1583, %v86
    %v1591 = vadd.f32 %v1584, %v87
    %v1592 = vadd.f32 %v1585, %v88
    %v1593 = vsel %vm122, %v1586, -inf
    %1594 = vmax.xlane.f32.xlu0 %v1593
    %v1595 = vpop.xlane.xlu0 %1594
    %v1596 = vsel %vm122, %v1587, -inf
    %1597 = vmax.xlane.f32.xlu0 %v1596
    %v1598 = vpop.xlane.xlu0 %1597
    %v1599 = vsel %vm122, %v1588, -inf
    %1600 = vmax.xlane.f32.xlu0 %v1599
    %v1601 = vpop.xlane.xlu0 %1600
    %v1602 = vsel %vm122, %v1589, -inf
    %1603 = vmax.xlane.f32.xlu0 %v1602
    %v1604 = vpop.xlane.xlu0 %1603
    %v1605 = vsel %vm122, %v1590, -inf
    %1606 = vmax.xlane.f32.xlu0 %v1605
    %v1607 = vpop.xlane.xlu0 %1606
    %v1608 = vsel %vm122, %v1591, -inf
    %1609 = vmax.xlane.f32.xlu0 %v1608
    %v1610 = vpop.xlane.xlu0 %1609
    %v1611 = vsel %vm122, %v1592, -inf
    %1612 = vmax.xlane.f32.xlu0 %v1611
    %v1613 = vpop.xlane.xlu0 %1612
    %v1614 = vsub.f32 %v1586, %v1595
    %v1615 = vsub.f32 %v1587, %v1598
    %v1616 = vsub.f32 %v1588, %v1601
    %v1617 = vsub.f32 %v1589, %v1604
    %v1618 = vsub.f32 %v1590, %v1607
    %v1619 = vsub.f32 %v1591, %v1610
    %v1620 = vsub.f32 %v1592, %v1613
    %v1621 = vmul.f32 %v1614, 1.442695
    %v1622 = vpow.pop %v1621
    %v1623 = vmul.f32 %v1615, 1.442695
    %v1624 = vpow.pop %v1623
    %v1625 = vmul.f32 %v1616, 1.442695
    %v1626 = vpow.pop %v1625
    %v1627 = vmul.f32 %v1617, 1.442695
    %v1628 = vpow.pop %v1627
    %v1629 = vmul.f32 %v1618, 1.442695
    %v1630 = vpow.pop %v1629
    %v1631 = vmul.f32 %v1619, 1.442695
    %v1632 = vpow.pop %v1631
    %v1633 = vmul.f32 %v1620, 1.442695
    %v1634 = vpow.pop %v1633
    %v1635 = vsel %vm122, %v1622, 0.0
    %1636 = vadd.xlane.f32.xlu0 %v1635
    %v1637 = vpop.xlane.xlu0 %1636
    %v1638 = vsel %vm122, %v1624, 0.0
    %1639 = vadd.xlane.f32.xlu0 %v1638
    %v1640 = vpop.xlane.xlu0 %1639
    %v1641 = vsel %vm122, %v1626, 0.0
    %1642 = vadd.xlane.f32.xlu0 %v1641
    %v1643 = vpop.xlane.xlu0 %1642
    %v1644 = vsel %vm122, %v1628, 0.0
    %1645 = vadd.xlane.f32.xlu0 %v1644
    %v1646 = vpop.xlane.xlu0 %1645
    %v1647 = vsel %vm122, %v1630, 0.0
    %1648 = vadd.xlane.f32.xlu0 %v1647
    %v1649 = vpop.xlane.xlu0 %1648
    %v1650 = vsel %vm122, %v1632, 0.0
    %1651 = vadd.xlane.f32.xlu0 %v1650
    %v1652 = vpop.xlane.xlu0 %1651
    %v1653 = vsel %vm122, %v1634, 0.0
    %1654 = vadd.xlane.f32.xlu0 %v1653
    %v1655 = vpop.xlane.xlu0 %1654
    %v1656 = vrcp.pop %v1637
    %v1657 = vrcp.pop %v1640
    %v1658 = vrcp.pop %v1643
    %v1659 = vrcp.pop %v1646
    %v1660 = vrcp.pop %v1649
    %v1661 = vrcp.pop %v1652
    %v1662 = vrcp.pop %v1655
    %v1663 = vmul.f32 %v1622, %v1656
    %v1664 = vmul.f32 %v1624, %v1657
    %v1665 = vmul.f32 %v1626, %v1658
    %v1666 = vmul.f32 %v1628, %v1659
    %v1667 = vmul.f32 %v1630, %v1660
    %v1668 = vmul.f32 %v1632, %v1661
    %v1669 = vmul.f32 %v1634, %v1662
    %v1670 = vpack.c.bf16 %v1664, %v1663
    %v1671 = vpack.c.bf16 %v1666, %v1665
    %v1672 = vpack.c.bf16 %v1668, %v1667
    %v1673 = vpack.c.bf16 %v1669, %v1669
    %v1675 = vsel %vm122, %v1670, 0
    %v1678 = vsel %vm122, %v1671, 0
    %v1681 = vsel %vm122, %v1672, 0
    %v1684 = vsel %vm122, %v1673, 0
    %v1687 = vsel %vm282, %v1526, 0
    %1689 = vmatpush.bf16.msra.mxu0 0
    %1690 = vmatpush.bf16.msra.mxu0 0
    %1691 = vmatpush.bf16.msra.mxu0 0
    %1692 = vmatpush.bf16.msra.mxu0 0
    %1693 = vmatpush.bf16.msra.mxu0 %v1687
    %1694 = vmatpush.bf16.msra.mxu0 %v1525
    %1695 = vmatpush.bf16.msra.mxu0 %v1524
    %1696 = vmatpush.bf16.msra.mxu0 %v1523
    %1697 = vmatmul.bf16.gmra.mxu0 %v1675
    %v1698 = vpop.f32.mrf.mxu0
    %v1699 = vadd.f32 0.0, %v1698
    %v1700 = vpop.f32.mrf.mxu0
    %v1701 = vadd.f32 0.0, %v1700
    %1702 = vmatmul.bf16.gmra.mxu0 %v1678
    %v1703 = vpop.f32.mrf.mxu0
    %v1704 = vadd.f32 0.0, %v1703
    %v1705 = vpop.f32.mrf.mxu0
    %v1706 = vadd.f32 0.0, %v1705
    %1707 = vmatmul.bf16.gmra.mxu0 %v1681
    %v1708 = vpop.f32.mrf.mxu0
    %v1709 = vadd.f32 0.0, %v1708
    %v1710 = vpop.f32.mrf.mxu0
    %v1711 = vadd.f32 0.0, %v1710
    %1712 = vmatmul.bf16.gmra.mxu0 %v1684
    %v1713 = vpop.f32.mrf.mxu0
    %v1714 = vadd.f32 0.0, %v1713
    %v1715 = vpop.f32.mrf.mxu0
    %1716 = vdwg.mxu0
    %s1717 = scalar_lea.vmem [#allocation10], 336
    %1718 = vst.msk [vmem:[%s1717] sm:$0xff] %vm122, %v1699
    %1719 = vst.msk [vmem:[%s1717 + $0x8] sm:$0xff] %vm122, %v1701
    %1720 = vst.msk [vmem:[%s1717 + $0x10] sm:$0xff] %vm122, %v1704
    %1721 = vst.msk [vmem:[%s1717 + $0x18] sm:$0xff] %vm122, %v1706
    %1722 = vst.msk [vmem:[%s1717 + $0x20] sm:$0xff] %vm122, %v1709
    %1723 = vst.msk [vmem:[%s1717 + $0x28] sm:$0xff] %vm122, %v1711
    %1724 = vst.msk [vmem:[%s1717 + $0x30] sm:$0xff] %vm122, %v1714
    %s1725 = scalar_lea.vmem [#allocation2], 392
    %v1726 = vld [vmem:[%s1725] sm:$0xff]
    %v1727 = vld [vmem:[%s1725 + $0x8] sm:$0xff]
    %v1728 = vld [vmem:[%s1725 + $0x10] sm:$0xff]
    %v1729 = vld [vmem:[%s1725 + $0x18] sm:$0xff]
    %v1730 = vld [vmem:[%s1725 + $0x20] sm:$0xff]
    %v1731 = vld [vmem:[%s1725 + $0x28] sm:$0xff]
    %v1732 = vld [vmem:[%s1725 + $0x30] sm:$0xff]
    %v1733 = vpack.c.bf16 %v1727, %v1726
    %v1734 = vpack.c.bf16 %v1729, %v1728
    %v1735 = vpack.c.bf16 %v1731, %v1730
    %v1736 = vpack.c.bf16 %v1732, %v1732
    %s1737 = scalar_lea.vmem [#allocation5], 392
    %v1738 = vld [vmem:[%s1737] sm:$0xff]
    %v1739 = vld [vmem:[%s1737 + $0x8] sm:$0xff]
    %v1740 = vld [vmem:[%s1737 + $0x10] sm:$0xff]
    %v1741 = vld [vmem:[%s1737 + $0x18] sm:$0xff]
    %v1742 = vld [vmem:[%s1737 + $0x20] sm:$0xff]
    %v1743 = vld [vmem:[%s1737 + $0x28] sm:$0xff]
    %v1744 = vld [vmem:[%s1737 + $0x30] sm:$0xff]
    %v1745 = vpack.c.bf16 %v1739, %v1738
    %v1746 = vpack.c.bf16 %v1741, %v1740
    %v1747 = vpack.c.bf16 %v1743, %v1742
    %v1748 = vpack.c.bf16 %v1744, %v1744
    %s1749 = scalar_lea.vmem [#allocation7], 392
    %v1750 = vld [vmem:[%s1749] sm:$0xff]
    %v1751 = vld [vmem:[%s1749 + $0x8] sm:$0xff]
    %v1752 = vld [vmem:[%s1749 + $0x10] sm:$0xff]
    %v1753 = vld [vmem:[%s1749 + $0x18] sm:$0xff]
    %v1754 = vld [vmem:[%s1749 + $0x20] sm:$0xff]
    %v1755 = vld [vmem:[%s1749 + $0x28] sm:$0xff]
    %v1756 = vld [vmem:[%s1749 + $0x30] sm:$0xff]
    %v1757 = vpack.c.bf16 %v1751, %v1750
    %v1758 = vpack.c.bf16 %v1753, %v1752
    %v1759 = vpack.c.bf16 %v1755, %v1754
    %v1760 = vpack.c.bf16 %v1756, %v1756
    %v1762 = vsel %vm122, %v1733, 0
    %v1765 = vsel %vm122, %v1734, 0
    %v1768 = vsel %vm122, %v1735, 0
    %v1771 = vsel %vm122, %v1736, 0
    %v1774 = vsel %vm122, %v1745, 0
    %v1777 = vsel %vm122, %v1746, 0
    %v1780 = vsel %vm122, %v1747, 0
    %v1783 = vsel %vm122, %v1748, 0
    %1785 = vmatpush.bf16.xpose.msra.mxu0 0
    %1786 = vmatpush.bf16.xpose.msra.mxu0 0
    %1787 = vmatpush.bf16.xpose.msra.mxu0 0
    %1788 = vmatpush.bf16.xpose.msra.mxu0 0
    %1789 = vmatpush.bf16.xpose.msra.mxu0 %v1783
    %1790 = vmatpush.bf16.xpose.msra.mxu0 %v1780
    %1791 = vmatpush.bf16.xpose.msra.mxu0 %v1777
    %1792 = vmatpush.bf16.xpose.msra.mxu0 %v1774
    %1793 = vmatmul.bf16.gmra.mxu0 %v1762
    %v1794 = vpop.f32.mrf.mxu0
    %v1795 = vadd.f32 0.0, %v1794
    %v1796 = vpop.f32.mrf.mxu0
    %v1797 = vadd.f32 0.0, %v1796
    %1798 = vmatmul.bf16.gmra.mxu0 %v1765
    %v1799 = vpop.f32.mrf.mxu0
    %v1800 = vadd.f32 0.0, %v1799
    %v1801 = vpop.f32.mrf.mxu0
    %v1802 = vadd.f32 0.0, %v1801
    %1803 = vmatmul.bf16.gmra.mxu0 %v1768
    %v1804 = vpop.f32.mrf.mxu0
    %v1805 = vadd.f32 0.0, %v1804
    %v1806 = vpop.f32.mrf.mxu0
    %v1807 = vadd.f32 0.0, %v1806
    %1808 = vmatmul.bf16.gmra.mxu0 %v1771
    %v1809 = vpop.f32.mrf.mxu0
    %v1810 = vadd.f32 0.0, %v1809
    %v1811 = vpop.f32.mrf.mxu0
    %1812 = vdwg.mxu0
    %v1813 = vmul.f32 %v1795, 0.13363062
    %v1814 = vmul.f32 %v1797, 0.13363062
    %v1815 = vmul.f32 %v1800, 0.13363062
    %v1816 = vmul.f32 %v1802, 0.13363062
    %v1817 = vmul.f32 %v1805, 0.13363062
    %v1818 = vmul.f32 %v1807, 0.13363062
    %v1819 = vmul.f32 %v1810, 0.13363062
    %v1820 = vadd.f32 %v1813, %v82
    %v1821 = vadd.f32 %v1814, %v83
    %v1822 = vadd.f32 %v1815, %v84
    %v1823 = vadd.f32 %v1816, %v85
    %v1824 = vadd.f32 %v1817, %v86
    %v1825 = vadd.f32 %v1818, %v87
    %v1826 = vadd.f32 %v1819, %v88
    %v1827 = vsel %vm122, %v1820, -inf
    %1828 = vmax.xlane.f32.xlu0 %v1827
    %v1829 = vpop.xlane.xlu0 %1828
    %v1830 = vsel %vm122, %v1821, -inf
    %1831 = vmax.xlane.f32.xlu0 %v1830
    %v1832 = vpop.xlane.xlu0 %1831
    %v1833 = vsel %vm122, %v1822, -inf
    %1834 = vmax.xlane.f32.xlu0 %v1833
    %v1835 = vpop.xlane.xlu0 %1834
    %v1836 = vsel %vm122, %v1823, -inf
    %1837 = vmax.xlane.f32.xlu0 %v1836
    %v1838 = vpop.xlane.xlu0 %1837
    %v1839 = vsel %vm122, %v1824, -inf
    %1840 = vmax.xlane.f32.xlu0 %v1839
    %v1841 = vpop.xlane.xlu0 %1840
    %v1842 = vsel %vm122, %v1825, -inf
    %1843 = vmax.xlane.f32.xlu0 %v1842
    %v1844 = vpop.xlane.xlu0 %1843
    %v1845 = vsel %vm122, %v1826, -inf
    %1846 = vmax.xlane.f32.xlu0 %v1845
    %v1847 = vpop.xlane.xlu0 %1846
    %v1848 = vsub.f32 %v1820, %v1829
    %v1849 = vsub.f32 %v1821, %v1832
    %v1850 = vsub.f32 %v1822, %v1835
    %v1851 = vsub.f32 %v1823, %v1838
    %v1852 = vsub.f32 %v1824, %v1841
    %v1853 = vsub.f32 %v1825, %v1844
    %v1854 = vsub.f32 %v1826, %v1847
    %v1855 = vmul.f32 %v1848, 1.442695
    %v1856 = vpow.pop %v1855
    %v1857 = vmul.f32 %v1849, 1.442695
    %v1858 = vpow.pop %v1857
    %v1859 = vmul.f32 %v1850, 1.442695
    %v1860 = vpow.pop %v1859
    %v1861 = vmul.f32 %v1851, 1.442695
    %v1862 = vpow.pop %v1861
    %v1863 = vmul.f32 %v1852, 1.442695
    %v1864 = vpow.pop %v1863
    %v1865 = vmul.f32 %v1853, 1.442695
    %v1866 = vpow.pop %v1865
    %v1867 = vmul.f32 %v1854, 1.442695
    %v1868 = vpow.pop %v1867
    %v1869 = vsel %vm122, %v1856, 0.0
    %1870 = vadd.xlane.f32.xlu0 %v1869
    %v1871 = vpop.xlane.xlu0 %1870
    %v1872 = vsel %vm122, %v1858, 0.0
    %1873 = vadd.xlane.f32.xlu0 %v1872
    %v1874 = vpop.xlane.xlu0 %1873
    %v1875 = vsel %vm122, %v1860, 0.0
    %1876 = vadd.xlane.f32.xlu0 %v1875
    %v1877 = vpop.xlane.xlu0 %1876
    %v1878 = vsel %vm122, %v1862, 0.0
    %1879 = vadd.xlane.f32.xlu0 %v1878
    %v1880 = vpop.xlane.xlu0 %1879
    %v1881 = vsel %vm122, %v1864, 0.0
    %1882 = vadd.xlane.f32.xlu0 %v1881
    %v1883 = vpop.xlane.xlu0 %1882
    %v1884 = vsel %vm122, %v1866, 0.0
    %1885 = vadd.xlane.f32.xlu0 %v1884
    %v1886 = vpop.xlane.xlu0 %1885
    %v1887 = vsel %vm122, %v1868, 0.0
    %1888 = vadd.xlane.f32.xlu0 %v1887
    %v1889 = vpop.xlane.xlu0 %1888
    %v1890 = vrcp.pop %v1871
    %v1891 = vrcp.pop %v1874
    %v1892 = vrcp.pop %v1877
    %v1893 = vrcp.pop %v1880
    %v1894 = vrcp.pop %v1883
    %v1895 = vrcp.pop %v1886
    %v1896 = vrcp.pop %v1889
    %v1897 = vmul.f32 %v1856, %v1890
    %v1898 = vmul.f32 %v1858, %v1891
    %v1899 = vmul.f32 %v1860, %v1892
    %v1900 = vmul.f32 %v1862, %v1893
    %v1901 = vmul.f32 %v1864, %v1894
    %v1902 = vmul.f32 %v1866, %v1895
    %v1903 = vmul.f32 %v1868, %v1896
    %v1904 = vpack.c.bf16 %v1898, %v1897
    %v1905 = vpack.c.bf16 %v1900, %v1899
    %v1906 = vpack.c.bf16 %v1902, %v1901
    %v1907 = vpack.c.bf16 %v1903, %v1903
    %v1909 = vsel %vm122, %v1904, 0
    %v1912 = vsel %vm122, %v1905, 0
    %v1915 = vsel %vm122, %v1906, 0
    %v1918 = vsel %vm122, %v1907, 0
    %v1921 = vsel %vm282, %v1760, 0
    %1923 = vmatpush.bf16.msra.mxu0 0
    %1924 = vmatpush.bf16.msra.mxu0 0
    %1925 = vmatpush.bf16.msra.mxu0 0
    %1926 = vmatpush.bf16.msra.mxu0 0
    %1927 = vmatpush.bf16.msra.mxu0 %v1921
    %1928 = vmatpush.bf16.msra.mxu0 %v1759
    %1929 = vmatpush.bf16.msra.mxu0 %v1758
    %1930 = vmatpush.bf16.msra.mxu0 %v1757
    %1931 = vmatmul.bf16.gmra.mxu0 %v1909
    %v1932 = vpop.f32.mrf.mxu0
    %v1933 = vadd.f32 0.0, %v1932
    %v1934 = vpop.f32.mrf.mxu0
    %v1935 = vadd.f32 0.0, %v1934
    %1936 = vmatmul.bf16.gmra.mxu0 %v1912
    %v1937 = vpop.f32.mrf.mxu0
    %v1938 = vadd.f32 0.0, %v1937
    %v1939 = vpop.f32.mrf.mxu0
    %v1940 = vadd.f32 0.0, %v1939
    %1941 = vmatmul.bf16.gmra.mxu0 %v1915
    %v1942 = vpop.f32.mrf.mxu0
    %v1943 = vadd.f32 0.0, %v1942
    %v1944 = vpop.f32.mrf.mxu0
    %v1945 = vadd.f32 0.0, %v1944
    %1946 = vmatmul.bf16.gmra.mxu0 %v1918
    %v1947 = vpop.f32.mrf.mxu0
    %v1948 = vadd.f32 0.0, %v1947
    %v1949 = vpop.f32.mrf.mxu0
    %1950 = vdwg.mxu0
    %s1951 = scalar_lea.vmem [#allocation10], 392
    %1952 = vst.msk [vmem:[%s1951] sm:$0xff] %vm122, %v1933
    %1953 = vst.msk [vmem:[%s1951 + $0x8] sm:$0xff] %vm122, %v1935
    %1954 = vst.msk [vmem:[%s1951 + $0x10] sm:$0xff] %vm122, %v1938
    %1955 = vst.msk [vmem:[%s1951 + $0x18] sm:$0xff] %vm122, %v1940
    %1956 = vst.msk [vmem:[%s1951 + $0x20] sm:$0xff] %vm122, %v1943
    %1957 = vst.msk [vmem:[%s1951 + $0x28] sm:$0xff] %vm122, %v1945
    %1958 = vst.msk [vmem:[%s1951 + $0x30] sm:$0xff] %vm122, %v1948
    // Predicated region
    $region34: #{masked_attention.1} parent=1 // pred_check
      _
    $region35: #{masked_attention.1} parent=1 // pred_check_branch
      %1960 = sbr.rel (0) target = $region37
    $region36: #{masked_attention.1} parent=1 // pred_region
      %1962 = vsyncadd [#allocation4], 0
      %s1963 = sshll.u32 [#allocation10], 4
      %s1964 = int_to_ptr.vmem [resolvable:$true] %s1963
      %s1965 = sshll.u32 %s4, 4
      %s1966 = int_to_ptr.hbm [resolvable:$true] %s1965
      %1971 = dma.vmem_to_hbm [thread:$0]  %s1964, 7168, %s1966, [#allocation4], 128, 128, 8
    $region37: #{masked_attention.1} parent=1 // pred_fallthru
      _
    // Predicated region
    $region38: #{masked_attention.1} parent=1 // pred_check
      _
    $region39: #{masked_attention.1} parent=1 // pred_check_branch
      %1973 = sbr.rel (0) target = $region41
    $region40: #{masked_attention.1} parent=1 // pred_region
      %1975 = dma.done [#allocation4], 7168
    $region41: #{masked_attention.1} parent=1 // pred_fallthru
      _
    %1976 = vsyncpa [#allocation3], 1
    %1977 = vsyncpa [#allocation6], 1
    %1978 = vsyncpa [#allocation9], 1
    %1979 = vsyncpa [#allocation4], 1

</llo_original>
